<compile_context>
chip_gen: v5e
topology: v5e:2x2
jax: 0.10.0
libtpu: 0.0.40
codegen_flags: <defaults>
</compile_context>

<pallas_src>
import functools
import numpy as np
import jax
import jax.numpy as jnp
from jax.experimental import pallas as pl
from jax.experimental.pallas import tpu as pltpu

F32 = jnp.float32
VMEM = pltpu.MemorySpace.VMEM
SMEM = pltpu.MemorySpace.SMEM
VMEM_SPEC = pl.BlockSpec(memory_space=VMEM)
SMEM_SPEC = pl.BlockSpec(memory_space=SMEM)


# ----------------------------- layout helpers -------------------------------

def _dense(x):
    """Present a lane-dense (rows, 128) view to elementwise kernels when possible."""
    if x.shape[-1] % 128 == 0:
        return x
    n = x.size
    if n % 128 == 0:
        return x.reshape(n // 128, 128)
    return x


def _pick_rows(rows, cap=512):
    """Largest row-block dividing `rows`, <= cap, multiple of 8 unless it is the full dim."""
    if rows <= cap:
        return rows
    for tr in range(cap, 7, -1):
        if rows % tr == 0 and tr % 8 == 0:
            return tr
    return rows


# ----------------------------- Pallas kernels ------------------------------

def _polar2cart_kernel(ang_ref, re_ref, im_ref):
    # slm_amp == 1 in the reference code, so field = exp(i*angle)
    a = ang_ref[...]
    re_ref[...] = jnp.cos(a)
    im_ref[...] = jnp.sin(a)


def _amp_mse_kernel(s0_ref, rr_ref, ri_ref, tgt_ref, amp_ref, loss_ref, *, inv_n):
    # fused: out_amp = s0*|u|  and  MSE(out_amp, target) partial-sum accumulation
    @pl.when(pl.program_id(0) == 0)
    def _():
        loss_ref[...] = jnp.zeros_like(loss_ref)

    s0 = s0_ref[0, 0]
    rr = rr_ref[...]
    ri = ri_ref[...]
    amp = s0 * jnp.sqrt(rr * rr + ri * ri)
    amp_ref[...] = amp
    d = amp - tgt_ref[...]
    part = jnp.sum(jnp.sum(d * d, axis=1, keepdims=True), axis=0, keepdims=True)
    loss_ref[...] = loss_ref[...] + part * jnp.float32(inv_n)


def _adam_kernel(hyp_ref, g_ref, m_ref, v_ref, p_ref, nm_ref, nv_ref, np_ref):
    lr = hyp_ref[0, 0]
    b1 = hyp_ref[0, 1]
    b2 = hyp_ref[0, 2]
    eps = hyp_ref[0, 3]
    ibc1 = hyp_ref[0, 4]   # 1 / (1 - b1**t)
    ibc2 = hyp_ref[0, 5]   # 1 / (1 - b2**t)
    g = g_ref[...]
    m = b1 * m_ref[...] + (1.0 - b1) * g
    v = b2 * v_ref[...] + (1.0 - b2) * g * g
    nm_ref[...] = m
    nv_ref[...] = v
    denom = jnp.sqrt(v * ibc2) + eps
    np_ref[...] = p_ref[...] - lr * (m * ibc1) * pl.reciprocal(denom, approx=True)


def _ssim_kernel(x_ref, y_ref, gv_ref, gh_ref, o_ref):
    # separable 11x11 Gaussian, 'valid' padding, done as banded-matrix matmuls (MXU)
    x = x_ref[...]
    y = y_ref[...]
    gv = gv_ref[...]          # (Hv, H)
    gh = gh_ref[...]          # (W, Wv)

    def blur(img):
        t = jnp.dot(img, gh, preferred_element_type=jnp.float32)   # (H, Wv)
        return jnp.dot(gv, t, preferred_element_type=jnp.float32)  # (Hv, Wv)

    mu_x = blur(x)
    mu_y = blur(y)
    sxx = blur(x * x) - mu_x * mu_x
    syy = blur(y * y) - mu_y * mu_y
    sxy = blur(x * y) - mu_x * mu_y
    c1 = 0.01 ** 2
    c2 = 0.03 ** 2
    ssim_map = ((2.0 * mu_x * mu_y + c1) * (2.0 * sxy + c2)) / (
        (mu_x * mu_x + mu_y * mu_y + c1) * (sxx + syy + c2))
    s = jnp.sum(ssim_map, axis=1, keepdims=True)
    o_ref[...] = jnp.sum(s, axis=0, keepdims=True) / jnp.float32(ssim_map.size)


# ----------------------------- pallas_call wrappers -------------------------

def _polar2cart_p(angle):
    shape = angle.shape
    a2 = _dense(angle)
    rows, lanes = a2.shape
    tr = _pick_rows(rows)
    spec = pl.BlockSpec((tr, lanes), lambda i: (i, 0))
    s = jax.ShapeDtypeStruct((rows, lanes), F32)
    re2, im2 = pl.pallas_call(
        _polar2cart_kernel,
        out_shape=(s, s),
        grid=(rows // tr,),
        in_specs=[spec],
        out_specs=(spec, spec),
        compiler_params=pltpu.CompilerParams(dimension_semantics=("parallel",)),
    )(a2)
    return re2.reshape(shape), im2.reshape(shape)


def _amp_mse_p(rr, ri, s0, target):
    shape = rr.shape
    rr2, ri2, tg2 = _dense(rr), _dense(ri), _dense(target)
    rows, lanes = rr2.shape
    tr = _pick_rows(rows)
    spec = pl.BlockSpec((tr, lanes), lambda i: (i, 0))
    kernel = functools.partial(_amp_mse_kernel, inv_n=1.0 / float(rr.size))
    amp2, loss = pl.pallas_call(
        kernel,
        out_shape=(jax.ShapeDtypeStruct((rows, lanes), F32),
                   jax.ShapeDtypeStruct((1, 1), F32)),
        grid=(rows // tr,),
        in_specs=[SMEM_SPEC, spec, spec, spec],
        out_specs=(spec, pl.BlockSpec((1, 1), lambda i: (0, 0))),
        compiler_params=pltpu.CompilerParams(dimension_semantics=("arbitrary",)),
    )(s0, rr2, ri2, tg2)
    return amp2.reshape(shape), loss[0, 0]


def _adam_p(g, m, v, p, hyp):
    shape = p.shape
    g2, m2, v2, p2 = _dense(g), _dense(m), _dense(v), _dense(p)
    rows, lanes = p2.shape
    tr = _pick_rows(rows)
    spec = pl.BlockSpec((tr, lanes), lambda i: (i, 0))
    s = jax.ShapeDtypeStruct((rows, lanes), F32)
    nm, nv, np_ = pl.pallas_call(
        _adam_kernel,
        out_shape=(s, s, s),
        grid=(rows // tr,),
        in_specs=[SMEM_SPEC, spec, spec, spec, spec],
        out_specs=(spec, spec, spec),
        input_output_aliases={2: 0, 3: 1, 4: 2},   # m, v, p updated in place
        compiler_params=pltpu.CompilerParams(dimension_semantics=("parallel",)),
    )(hyp, g2, m2, v2, p2)
    return nm.reshape(shape), nv.reshape(shape), np_.reshape(shape)


def _ssim_p(x, y, gv, gh):
    return pl.pallas_call(
        _ssim_kernel,
        out_shape=jax.ShapeDtypeStruct((1, 1), F32),
        in_specs=[VMEM_SPEC, VMEM_SPEC, VMEM_SPEC, VMEM_SPEC],
        out_specs=VMEM_SPEC,
    )(x, y, gv, gh)


# ----------------------------- differentiable wrappers ----------------------

@jax.custom_vjp
def polar2cart(angle):
    return _polar2cart_p(angle)

def _p2c_fwd(angle):
    re, im = _polar2cart_p(angle)
    return (re, im), (re, im)

def _p2c_bwd(res, g):
    re, im = res
    g_re, g_im = g
    return ((-im) * g_re + re * g_im,)

polar2cart.defvjp(_p2c_fwd, _p2c_bwd)


@jax.custom_vjp
def amp_mse(rr, ri, s0, target):
    return _amp_mse_p(rr, ri, s0, target)

def _amp_mse_fwd(rr, ri, s0, target):
    out_amp, loss = _amp_mse_p(rr, ri, s0, target)
    return (out_amp, loss), (rr, ri, s0, target, out_amp)

def _amp_mse_bwd(res, cts):
    rr, ri, s0, target, out_amp = res
    g_amp, g_loss = cts
    n = out_amp.size
    d_loss_amp = g_loss * (2.0 / n) * (out_amp - target)
    g_total = g_amp + d_loss_amp
    amp = jnp.sqrt(rr * rr + ri * ri)
    inv = 1.0 / (amp + 1e-12)
    s0v = s0[0, 0]
    g_rr = g_total * s0v * rr * inv
    g_ri = g_total * s0v * ri * inv
    g_s0 = jnp.sum(g_total * amp).reshape(1, 1)
    g_target = -d_loss_amp
    return g_rr, g_ri, g_s0, g_target

amp_mse.defvjp(_amp_mse_fwd, _amp_mse_bwd)


# ----------------------------- SSIM helper matrices --------------------------

def _gauss_mats(H, W, win=11, sigma=1.5):
    g = np.exp(-((np.arange(win) - win // 2) ** 2) / (2.0 * sigma ** 2))
    g = (g / g.sum()).astype(np.float32)
    Hv, Wv = H - win + 1, W - win + 1
    gv = np.zeros((Hv, H), np.float32)
    for r in range(Hv):
        gv[r, r:r + win] = g
    gh = np.zeros((W, Wv), np.float32)
    for c in range(Wv):
        gh[c:c + win, c] = g
    return jnp.asarray(gv), jnp.asarray(gh)


# ----------------------------- gradient_decent module -----------------------

class GradientDescentPallas:
    """JAX/Pallas port of optimizeMethods.gradient_decent (lossName='MSE')."""

    def __init__(self, prop_dist=0.05, wavelength=520e-9, pix_pitch=6.4e-6,
                 num_iters=20, lossName='MSE', lr=0.01, lr_s=0.003, s0=1.0):
        assert lossName == 'MSE'  # the init/default loss in the reference loop is MSE
        self.prop_dist = float(prop_dist)
        self.wavelength = float(wavelength)
        self.pix_pitch = float(pix_pitch)
        self.num_iters = int(num_iters)
        self.lr = float(lr)
        self.lr_s = float(lr_s)
        self.s0 = float(s0)
        self._run = jax.jit(self._make_run())
        # TODO(synk): tensorboard SummaryWriter / progress printing are host side
        # effects with no Pallas equivalent and are omitted.

    def _asm_transfer(self, hp, wp):
        fy = jnp.fft.fftfreq(hp, d=self.pix_pitch)
        fx = jnp.fft.fftfreq(wp, d=self.pix_pitch)
        FX, FY = jnp.meshgrid(fx, fy, indexing='xy')
        arg = (1.0 / self.wavelength) ** 2 - FX ** 2 - FY ** 2
        kz = 2.0 * jnp.pi * jnp.sqrt(jnp.maximum(arg, 0.0))
        phase = kz * self.prop_dist
        valid = (arg > 0).astype(F32)
        return jax.lax.complex(valid * jnp.cos(phase),
                               valid * jnp.sin(phase)).astype(jnp.complex64)

    def _make_run(self):
        num_iters, lr, lr_s = self.num_iters, self.lr, self.lr_s
        b1, b2, eps = 0.9, 0.999, 1e-8

        def run(target, angle0, s0_init, Hc, gv, gh):
            H, W = target.shape
            ph, pw = H // 2, W // 2

            def prop_loss(angle, s0):
                re, im = polar2cart(angle)                           # Pallas
                # zero-pad (linear_conv=True) and the frequency-domain complex
                # multiply are left to XLA — the FFTs dominate and this avoids the
                # planar<->interleaved real/imag HBM round trips flagged in review.
                re_p = jnp.pad(re, ((ph, ph), (pw, pw)))
                im_p = jnp.pad(im, ((ph, ph), (pw, pw)))
                # TODO(synk): FFT/IFFT have no clean Pallas equivalent; use jnp.fft.
                U = jnp.fft.fft2(jax.lax.complex(re_p, im_p))
                u = jnp.fft.ifft2(U * Hc)
                rr = jnp.real(u)[ph:ph + H, pw:pw + W].astype(F32)
                ri = jnp.imag(u)[ph:ph + H, pw:pw + W].astype(F32)
                out_amp, loss = amp_mse(rr, ri, s0, target)          # fused Pallas
                return loss, out_amp

            grad_fn = jax.value_and_grad(prop_loss, argnums=(0, 1), has_aux=True)

            def step(k, carry):
                angle, s0, m_a, v_a, m_s, v_s, _, _ = carry
                (lossv, out_amp), (g_a, g_s) = grad_fn(angle, s0)
                t = (k + 1).astype(F32)
                bc1 = 1.0 - jnp.power(jnp.float32(b1), t)
                bc2 = 1.0 - jnp.power(jnp.float32(b2), t)
                hyp_a = jnp.stack([jnp.float32(lr), jnp.float32(b1), jnp.float32(b2),
                                   jnp.float32(eps), 1.0 / bc1, 1.0 / bc2]).reshape(1, 6)
                m_a, v_a, angle = _adam_p(g_a, m_a, v_a, angle, hyp_a)  # Pallas Adam
                if lr_s > 0:
                    # scalar s0 Adam in plain jnp (no pallas launch for a (1,1) scalar)
                    m_s = b1 * m_s + (1.0 - b1) * g_s
                    v_s = b2 * v_s + (1.0 - b2) * g_s * g_s
                    s0 = s0 - lr_s * (m_s / bc1) / (jnp.sqrt(v_s / bc2) + eps)
                return (angle, s0, m_a, v_a, m_s, v_s, out_amp, lossv)

            init = (angle0, s0_init,
                    jnp.zeros_like(angle0), jnp.zeros_like(angle0),
                    jnp.zeros_like(s0_init), jnp.zeros_like(s0_init),
                    jnp.zeros_like(target), jnp.zeros((), F32))
            angle, s0, _, _, _, _, out_amp, last_mse = jax.lax.fori_loop(
                0, num_iters, step, init)

            # final SSIM(s0_final * out_amp, target), as_loss=False -> SSIM value.
            # Note: matches the reference, which multiplies the already-scaled out_amp
            # by the post-update s0 once more.
            scaled = (s0[0, 0] * out_amp).astype(F32)
            ssim_v = _ssim_p(scaled, target, gv, gh)[0, 0]
            return angle, last_mse, ssim_v, out_amp * 255.0, target * 255.0

        return run

    def forward(self, target_amp, initial_angle):
        target = jnp.asarray(target_amp, dtype=F32)   # torch uses double; f32 on TPU
        angle0 = jnp.asarray(initial_angle, dtype=F32)
        s0_init = jnp.full((1, 1), self.s0, dtype=F32)
        H, W = target.shape
        Hc = self._asm_transfer(2 * H, 2 * W)          # deterministic ASM transfer fn
        gv, gh = _gauss_mats(H, W)                     # banded Gaussian matrices (MXU)
        return self._run(target, angle0, s0_init, Hc, gv, gh)


# ----------------------------------- main ------------------------------------

if __name__ == "__main__":
    key = jax.random.PRNGKey(0)
    k1, k2 = jax.random.split(key)
    H, W = 32, 64
    target = jax.random.uniform(k1, (H, W), dtype=F32)
    init_angle = jax.random.uniform(k2, (H, W), dtype=F32,
                                    minval=-np.pi, maxval=np.pi)

    model = GradientDescentPallas(prop_dist=0.05, wavelength=520e-9,
                                  pix_pitch=6.4e-6, num_iters=20,
                                  lossName='MSE', lr=0.01, lr_s=0.003, s0=1.0)
    opt_angle, mse_v, ssim_v, out_img, tgt_img = model.forward(target, init_angle)
    jax.block_until_ready((opt_angle, mse_v, ssim_v, out_img, tgt_img))
    print("KERNEL_OK")
</pallas_src>

<mosaic_0001>
module attributes {stable_mosaic.version = 11 : i64} {
  func.func @_polar2cart_kernel(%arg0: i32, %arg1: memref<16x128xf32, #tpu.memory_space<vmem>>, %arg2: memref<16x128xf32, #tpu.memory_space<vmem>>, %arg3: memref<16x128xf32, #tpu.memory_space<vmem>>) attributes {dimension_semantics = [#tpu.dimension_semantics<parallel>], iteration_bounds = array<i64: 1>, scalar_prefetch = 0 : i64, scratch_operands = 0 : i64, tpu.core_type = #tpu.core_type<tc>, window_params = [{transform_indices = @transform_0, window_bounds = array<i64: 16, 128>}, {transform_indices = @transform_1, window_bounds = array<i64: 16, 128>}, {transform_indices = @transform_2, window_bounds = array<i64: 16, 128>}]} {
    %c0 = arith.constant 0 : index
    %c0_0 = arith.constant 0 : index
    %0 = vector.load %arg1[%c0, %c0_0] : memref<16x128xf32, #tpu.memory_space<vmem>>, vector<16x128xf32>
    %1 = math.cos %0 : vector<16x128xf32>
    %c0_1 = arith.constant 0 : index
    %c0_2 = arith.constant 0 : index
    %2 = vector.load %arg2[%c0_1, %c0_2] : memref<16x128xf32, #tpu.memory_space<vmem>>, vector<16x128xf32>
    tpu.vector_store %arg2[%c0_1, %c0_2], %1 {strides = array<i32>} : memref<16x128xf32, #tpu.memory_space<vmem>>, vector<16x128xf32>,
    %3 = math.sin %0 : vector<16x128xf32>
    %c0_3 = arith.constant 0 : index
    %c0_4 = arith.constant 0 : index
    %4 = vector.load %arg3[%c0_3, %c0_4] : memref<16x128xf32, #tpu.memory_space<vmem>>, vector<16x128xf32>
    tpu.vector_store %arg3[%c0_3, %c0_4], %3 {strides = array<i32>} : memref<16x128xf32, #tpu.memory_space<vmem>>, vector<16x128xf32>,
    return
  }
  func.func @transform_0(%arg0: i32) -> (i32, i32) {
    %c0_i32 = arith.constant 0 : i32
    %c0_i32_0 = arith.constant 0 : i32
    return %arg0, %c0_i32 : i32, i32
  }
  func.func @transform_1(%arg0: i32) -> (i32, i32) {
    %c0_i32 = arith.constant 0 : i32
    %c0_i32_0 = arith.constant 0 : i32
    return %arg0, %c0_i32 : i32, i32
  }
  func.func @transform_2(%arg0: i32) -> (i32, i32) {
    %c0_i32 = arith.constant 0 : i32
    %c0_i32_0 = arith.constant 0 : i32
    return %arg0, %c0_i32 : i32, i32
  }
}

module attributes {stable_mosaic.version = 11 : i64} {
  func.func @_amp_mse_kernel(%arg0: i32, %arg1: memref<1x1xf32, #tpu.memory_space<smem>>, %arg2: memref<16x128xf32, #tpu.memory_space<vmem>>, %arg3: memref<16x128xf32, #tpu.memory_space<vmem>>, %arg4: memref<16x128xf32, #tpu.memory_space<vmem>>, %arg5: memref<16x128xf32, #tpu.memory_space<vmem>>, %arg6: memref<1x1xf32, #tpu.memory_space<vmem>>) attributes {dimension_semantics = [#tpu.dimension_semantics<arbitrary>], iteration_bounds = array<i64: 1>, scalar_prefetch = 0 : i64, scratch_operands = 0 : i64, tpu.core_type = #tpu.core_type<tc>, window_params = [{transform_indices = @transform_0, window_bounds = array<i64: 1, 1>}, {transform_indices = @transform_1, window_bounds = array<i64: 16, 128>}, {transform_indices = @transform_2, window_bounds = array<i64: 16, 128>}, {transform_indices = @transform_3, window_bounds = array<i64: 16, 128>}, {transform_indices = @transform_4, window_bounds = array<i64: 16, 128>}, {pipeline_mode = #tpu.pipeline_mode<synchronous>, transform_indices = @transform_5, window_bounds = array<i64: 1, 1>}]} {
    %c0_i32 = arith.constant 0 : i32
    %0 = arith.cmpi eq, %arg0, %c0_i32 : i32
    %1 = arith.extui %0 : i1 to i32
    %c0_i32_0 = arith.constant 0 : i32
    %2 = arith.cmpi ne, %1, %c0_i32_0 : i32
    scf.if %2 {
      %cst_16 = arith.constant 0.000000e+00 : f32
      %25 = vector.broadcast %cst_16 : f32 to vector<1x1xf32>
      %c0_17 = arith.constant 0 : index
      %c0_18 = arith.constant 0 : index
      %26 = vector.load %arg6[%c0_17, %c0_18] : memref<1x1xf32, #tpu.memory_space<vmem>>, vector<1x1xf32>
      tpu.vector_store %arg6[%c0_17, %c0_18], %25 {strides = array<i32>} : memref<1x1xf32, #tpu.memory_space<vmem>>, vector<1x1xf32>,
    } else {
    }
    %c0 = arith.constant 0 : index
    %c0_1 = arith.constant 0 : index
    %3 = memref.load %arg1[%c0, %c0_1] : memref<1x1xf32, #tpu.memory_space<smem>>
    %c0_2 = arith.constant 0 : index
    %c0_3 = arith.constant 0 : index
    %4 = vector.load %arg2[%c0_2, %c0_3] : memref<16x128xf32, #tpu.memory_space<vmem>>, vector<16x128xf32>
    %c0_4 = arith.constant 0 : index
    %c0_5 = arith.constant 0 : index
    %5 = vector.load %arg3[%c0_4, %c0_5] : memref<16x128xf32, #tpu.memory_space<vmem>>, vector<16x128xf32>
    %6 = arith.mulf %4, %4 : vector<16x128xf32>
    %7 = arith.mulf %5, %5 : vector<16x128xf32>
    %8 = arith.addf %6, %7 : vector<16x128xf32>
    %9 = math.sqrt %8 : vector<16x128xf32>
    %10 = vector.broadcast %3 : f32 to vector<16x128xf32>
    %11 = arith.mulf %10, %9 : vector<16x128xf32>
    %c0_6 = arith.constant 0 : index
    %c0_7 = arith.constant 0 : index
    %12 = vector.load %arg5[%c0_6, %c0_7] : memref<16x128xf32, #tpu.memory_space<vmem>>, vector<16x128xf32>
    tpu.vector_store %arg5[%c0_6, %c0_7], %11 {strides = array<i32>} : memref<16x128xf32, #tpu.memory_space<vmem>>, vector<16x128xf32>,
    %c0_8 = arith.constant 0 : index
    %c0_9 = arith.constant 0 : index
    %13 = vector.load %arg4[%c0_8, %c0_9] : memref<16x128xf32, #tpu.memory_space<vmem>>, vector<16x128xf32>
    %14 = arith.subf %11, %13 : vector<16x128xf32>
    %15 = arith.mulf %14, %14 : vector<16x128xf32>
    %cst = arith.constant dense<0.000000e+00> : vector<16xf32>
    %16 = vector.multi_reduction <add>, %15, %cst [1] : vector<16x128xf32> to vector<16xf32>
    %17 = vector.shape_cast %16 : vector<16xf32> to vector<16x1xf32>
    %cst_10 = arith.constant dense<0.000000e+00> : vector<1xf32>
    %18 = vector.multi_reduction <add>, %17, %cst_10 [0] : vector<16x1xf32> to vector<1xf32>
    %19 = vector.shape_cast %18 : vector<1xf32> to vector<1x1xf32>
    %c0_11 = arith.constant 0 : index
    %c0_12 = arith.constant 0 : index
    %20 = vector.load %arg6[%c0_11, %c0_12] : memref<1x1xf32, #tpu.memory_space<vmem>>, vector<1x1xf32>
    %cst_13 = arith.constant 4.8828125E-4 : f32
    %21 = vector.broadcast %cst_13 : f32 to vector<1x1xf32>
    %22 = arith.mulf %19, %21 : vector<1x1xf32>
    %23 = arith.addf %20, %22 : vector<1x1xf32>
    %c0_14 = arith.constant 0 : index
    %c0_15 = arith.constant 0 : index
    %24 = vector.load %arg6[%c0_14, %c0_15] : memref<1x1xf32, #tpu.memory_space<vmem>>, vector<1x1xf32>
    tpu.vector_store %arg6[%c0_14, %c0_15], %23 {strides = array<i32>} : memref<1x1xf32, #tpu.memory_space<vmem>>, vector<1x1xf32>,
    return
  }
  func.func @transform_0(%arg0: i32) -> (i32, i32) {
    %c0_i32 = arith.constant 0 : i32
    %c0_i32_0 = arith.constant 0 : i32
    %c0_i32_1 = arith.constant 0 : i32
    return %c0_i32, %c0_i32_0 : i32, i32
  }
  func.func @transform_1(%arg0: i32) -> (i32, i32) {
    %c0_i32 = arith.constant 0 : i32
    %c0_i32_0 = arith.constant 0 : i32
    return %arg0, %c0_i32 : i32, i32
  }
  func.func @transform_2(%arg0: i32) -> (i32, i32) {
    %c0_i32 = arith.constant 0 : i32
    %c0_i32_0 = arith.constant 0 : i32
    return %arg0, %c0_i32 : i32, i32
  }
  func.func @transform_3(%arg0: i32) -> (i32, i32) {
    %c0_i32 = arith.constant 0 : i32
    %c0_i32_0 = arith.constant 0 : i32
    return %arg0, %c0_i32 : i32, i32
  }
  func.func @transform_4(%arg0: i32) -> (i32, i32) {
    %c0_i32 = arith.constant 0 : i32
    %c0_i32_0 = arith.constant 0 : i32
    return %arg0, %c0_i32 : i32, i32
  }
  func.func @transform_5(%arg0: i32) -> (i32, i32) {
    %c0_i32 = arith.constant 0 : i32
    %c0_i32_0 = arith.constant 0 : i32
    %c0_i32_1 = arith.constant 0 : i32
    return %c0_i32, %c0_i32_0 : i32, i32
  }
}

module attributes {stable_mosaic.version = 11 : i64} {
  func.func @_ssim_kernel(%arg0: memref<32x64xf32, #tpu.memory_space<vmem>>, %arg1: memref<32x64xf32, #tpu.memory_space<vmem>>, %arg2: memref<22x32xf32, #tpu.memory_space<vmem>>, %arg3: memref<64x54xf32, #tpu.memory_space<vmem>>, %arg4: memref<1x1xf32, #tpu.memory_space<vmem>>) attributes {dimension_semantics = [], scalar_prefetch = 0 : i64, scratch_operands = 0 : i64, tpu.core_type = #tpu.core_type<tc>} {
    %c0 = arith.constant 0 : index
    %c0_0 = arith.constant 0 : index
    %0 = vector.load %arg0[%c0, %c0_0] : memref<32x64xf32, #tpu.memory_space<vmem>>, vector<32x64xf32>
    %c0_1 = arith.constant 0 : index
    %c0_2 = arith.constant 0 : index
    %1 = vector.load %arg1[%c0_1, %c0_2] : memref<32x64xf32, #tpu.memory_space<vmem>>, vector<32x64xf32>
    %c0_3 = arith.constant 0 : index
    %c0_4 = arith.constant 0 : index
    %2 = vector.load %arg2[%c0_3, %c0_4] : memref<22x32xf32, #tpu.memory_space<vmem>>, vector<22x32xf32>
    %c0_5 = arith.constant 0 : index
    %c0_6 = arith.constant 0 : index
    %3 = vector.load %arg3[%c0_5, %c0_6] : memref<64x54xf32, #tpu.memory_space<vmem>>, vector<64x54xf32>
    %cst = arith.constant dense<0.000000e+00> : vector<32x54xf32>
    %4 = tpu.matmul %0, %3, %cst {dimension_numbers = #tpu.dot_dimension_numbers<[1], [0], [0], [1], [0, 0, 1, 1], [], []>} : vector<32x64xf32>, vector<64x54xf32>, vector<32x54xf32> -> vector<32x54xf32>
    %cst_7 = arith.constant dense<0.000000e+00> : vector<22x54xf32>
    %5 = tpu.matmul %2, %4, %cst_7 {dimension_numbers = #tpu.dot_dimension_numbers<[1], [0], [0], [1], [0, 0, 1, 1], [], []>} : vector<22x32xf32>, vector<32x54xf32>, vector<22x54xf32> -> vector<22x54xf32>
    %cst_8 = arith.constant dense<0.000000e+00> : vector<32x54xf32>
    %6 = tpu.matmul %1, %3, %cst_8 {dimension_numbers = #tpu.dot_dimension_numbers<[1], [0], [0], [1], [0, 0, 1, 1], [], []>} : vector<32x64xf32>, vector<64x54xf32>, vector<32x54xf32> -> vector<32x54xf32>
    %cst_9 = arith.constant dense<0.000000e+00> : vector<22x54xf32>
    %7 = tpu.matmul %2, %6, %cst_9 {dimension_numbers = #tpu.dot_dimension_numbers<[1], [0], [0], [1], [0, 0, 1, 1], [], []>} : vector<22x32xf32>, vector<32x54xf32>, vector<22x54xf32> -> vector<22x54xf32>
    %8 = arith.mulf %0, %0 : vector<32x64xf32>
    %cst_10 = arith.constant dense<0.000000e+00> : vector<32x54xf32>
    %9 = tpu.matmul %8, %3, %cst_10 {dimension_numbers = #tpu.dot_dimension_numbers<[1], [0], [0], [1], [0, 0, 1, 1], [], []>} : vector<32x64xf32>, vector<64x54xf32>, vector<32x54xf32> -> vector<32x54xf32>
    %cst_11 = arith.constant dense<0.000000e+00> : vector<22x54xf32>
    %10 = tpu.matmul %2, %9, %cst_11 {dimension_numbers = #tpu.dot_dimension_numbers<[1], [0], [0], [1], [0, 0, 1, 1], [], []>} : vector<22x32xf32>, vector<32x54xf32>, vector<22x54xf32> -> vector<22x54xf32>
    %11 = arith.mulf %5, %5 : vector<22x54xf32>
    %12 = arith.subf %10, %11 : vector<22x54xf32>
    %13 = arith.mulf %1, %1 : vector<32x64xf32>
    %cst_12 = arith.constant dense<0.000000e+00> : vector<32x54xf32>
    %14 = tpu.matmul %13, %3, %cst_12 {dimension_numbers = #tpu.dot_dimension_numbers<[1], [0], [0], [1], [0, 0, 1, 1], [], []>} : vector<32x64xf32>, vector<64x54xf32>, vector<32x54xf32> -> vector<32x54xf32>
    %cst_13 = arith.constant dense<0.000000e+00> : vector<22x54xf32>
    %15 = tpu.matmul %2, %14, %cst_13 {dimension_numbers = #tpu.dot_dimension_numbers<[1], [0], [0], [1], [0, 0, 1, 1], [], []>} : vector<22x32xf32>, vector<32x54xf32>, vector<22x54xf32> -> vector<22x54xf32>
    %16 = arith.mulf %7, %7 : vector<22x54xf32>
    %17 = arith.subf %15, %16 : vector<22x54xf32>
    %18 = arith.mulf %0, %1 : vector<32x64xf32>
    %cst_14 = arith.constant dense<0.000000e+00> : vector<32x54xf32>
    %19 = tpu.matmul %18, %3, %cst_14 {dimension_numbers = #tpu.dot_dimension_numbers<[1], [0], [0], [1], [0, 0, 1, 1], [], []>} : vector<32x64xf32>, vector<64x54xf32>, vector<32x54xf32> -> vector<32x54xf32>
    %cst_15 = arith.constant dense<0.000000e+00> : vector<22x54xf32>
    %20 = tpu.matmul %2, %19, %cst_15 {dimension_numbers = #tpu.dot_dimension_numbers<[1], [0], [0], [1], [0, 0, 1, 1], [], []>} : vector<22x32xf32>, vector<32x54xf32>, vector<22x54xf32> -> vector<22x54xf32>
    %21 = arith.mulf %5, %7 : vector<22x54xf32>
    %22 = arith.subf %20, %21 : vector<22x54xf32>
    %cst_16 = arith.constant 2.000000e+00 : f32
    %23 = vector.broadcast %cst_16 : f32 to vector<22x54xf32>
    %24 = arith.mulf %23, %5 : vector<22x54xf32>
    %25 = arith.mulf %24, %7 : vector<22x54xf32>
    %cst_17 = arith.constant 9.99999974E-5 : f32
    %26 = vector.broadcast %cst_17 : f32 to vector<22x54xf32>
    %27 = arith.addf %25, %26 : vector<22x54xf32>
    %cst_18 = arith.constant 2.000000e+00 : f32
    %28 = vector.broadcast %cst_18 : f32 to vector<22x54xf32>
    %29 = arith.mulf %28, %22 : vector<22x54xf32>
    %cst_19 = arith.constant 8.99999984E-4 : f32
    %30 = vector.broadcast %cst_19 : f32 to vector<22x54xf32>
    %31 = arith.addf %29, %30 : vector<22x54xf32>
    %32 = arith.mulf %27, %31 : vector<22x54xf32>
    %33 = arith.mulf %5, %5 : vector<22x54xf32>
    %34 = arith.mulf %7, %7 : vector<22x54xf32>
    %35 = arith.addf %33, %34 : vector<22x54xf32>
    %cst_20 = arith.constant 9.99999974E-5 : f32
    %36 = vector.broadcast %cst_20 : f32 to vector<22x54xf32>
    %37 = arith.addf %35, %36 : vector<22x54xf32>
    %38 = arith.addf %12, %17 : vector<22x54xf32>
    %cst_21 = arith.constant 8.99999984E-4 : f32
    %39 = vector.broadcast %cst_21 : f32 to vector<22x54xf32>
    %40 = arith.addf %38, %39 : vector<22x54xf32>
    %41 = arith.mulf %37, %40 : vector<22x54xf32>
    %42 = arith.divf %32, %41 : vector<22x54xf32>
    %cst_22 = arith.constant dense<0.000000e+00> : vector<22xf32>
    %43 = vector.multi_reduction <add>, %42, %cst_22 [1] : vector<22x54xf32> to vector<22xf32>
    %44 = vector.shape_cast %43 : vector<22xf32> to vector<22x1xf32>
    %cst_23 = arith.constant dense<0.000000e+00> : vector<1xf32>
    %45 = vector.multi_reduction <add>, %44, %cst_23 [0] : vector<22x1xf32> to vector<1xf32>
    %46 = vector.shape_cast %45 : vector<1xf32> to vector<1x1xf32>
    %cst_24 = arith.constant 1.188000e+03 : f32
    %47 = vector.broadcast %cst_24 : f32 to vector<1x1xf32>
    %48 = arith.divf %46, %47 : vector<1x1xf32>
    %c0_25 = arith.constant 0 : index
    %c0_26 = arith.constant 0 : index
    %49 = vector.load %arg4[%c0_25, %c0_26] : memref<1x1xf32, #tpu.memory_space<vmem>>, vector<1x1xf32>
    tpu.vector_store %arg4[%c0_25, %c0_26], %48 {strides = array<i32>} : memref<1x1xf32, #tpu.memory_space<vmem>>, vector<1x1xf32>,
    return
  }
}

module attributes {stable_mosaic.version = 11 : i64} {
  func.func @_adam_kernel(%arg0: i32, %arg1: memref<1x6xf32, #tpu.memory_space<smem>>, %arg2: memref<16x128xf32, #tpu.memory_space<vmem>>, %arg3: memref<16x128xf32, #tpu.memory_space<vmem>>, %arg4: memref<16x128xf32, #tpu.memory_space<vmem>>, %arg5: memref<16x128xf32, #tpu.memory_space<vmem>>, %arg6: memref<16x128xf32, #tpu.memory_space<vmem>>, %arg7: memref<16x128xf32, #tpu.memory_space<vmem>>, %arg8: memref<16x128xf32, #tpu.memory_space<vmem>>) attributes {dimension_semantics = [#tpu.dimension_semantics<parallel>], iteration_bounds = array<i64: 1>, scalar_prefetch = 0 : i64, scratch_operands = 0 : i64, tpu.core_type = #tpu.core_type<tc>, window_params = [{transform_indices = @transform_0, window_bounds = array<i64: 1, 6>}, {transform_indices = @transform_1, window_bounds = array<i64: 16, 128>}, {transform_indices = @transform_2, window_bounds = array<i64: 16, 128>}, {transform_indices = @transform_3, window_bounds = array<i64: 16, 128>}, {transform_indices = @transform_4, window_bounds = array<i64: 16, 128>}, {transform_indices = @transform_5, window_bounds = array<i64: 16, 128>}, {transform_indices = @transform_6, window_bounds = array<i64: 16, 128>}, {transform_indices = @transform_7, window_bounds = array<i64: 16, 128>}]} {
    %c0 = arith.constant 0 : index
    %c0_0 = arith.constant 0 : index
    %0 = memref.load %arg1[%c0, %c0_0] : memref<1x6xf32, #tpu.memory_space<smem>>
    %c0_1 = arith.constant 0 : index
    %c1 = arith.constant 1 : index
    %1 = memref.load %arg1[%c0_1, %c1] : memref<1x6xf32, #tpu.memory_space<smem>>
    %c0_2 = arith.constant 0 : index
    %c2 = arith.constant 2 : index
    %2 = memref.load %arg1[%c0_2, %c2] : memref<1x6xf32, #tpu.memory_space<smem>>
    %c0_3 = arith.constant 0 : index
    %c3 = arith.constant 3 : index
    %3 = memref.load %arg1[%c0_3, %c3] : memref<1x6xf32, #tpu.memory_space<smem>>
    %c0_4 = arith.constant 0 : index
    %c4 = arith.constant 4 : index
    %4 = memref.load %arg1[%c0_4, %c4] : memref<1x6xf32, #tpu.memory_space<smem>>
    %c0_5 = arith.constant 0 : index
    %c5 = arith.constant 5 : index
    %5 = memref.load %arg1[%c0_5, %c5] : memref<1x6xf32, #tpu.memory_space<smem>>
    %c0_6 = arith.constant 0 : index
    %c0_7 = arith.constant 0 : index
    %6 = vector.load %arg2[%c0_6, %c0_7] : memref<16x128xf32, #tpu.memory_space<vmem>>, vector<16x128xf32>
    %c0_8 = arith.constant 0 : index
    %c0_9 = arith.constant 0 : index
    %7 = vector.load %arg3[%c0_8, %c0_9] : memref<16x128xf32, #tpu.memory_space<vmem>>, vector<16x128xf32>
    %8 = vector.broadcast %1 : f32 to vector<16x128xf32>
    %9 = arith.mulf %8, %7 : vector<16x128xf32>
    %cst = arith.constant 1.000000e+00 : f32
    %10 = arith.subf %cst, %1 : f32
    %11 = vector.broadcast %10 : f32 to vector<16x128xf32>
    %12 = arith.mulf %11, %6 : vector<16x128xf32>
    %13 = arith.addf %9, %12 : vector<16x128xf32>
    %c0_10 = arith.constant 0 : index
    %c0_11 = arith.constant 0 : index
    %14 = vector.load %arg4[%c0_10, %c0_11] : memref<16x128xf32, #tpu.memory_space<vmem>>, vector<16x128xf32>
    %15 = vector.broadcast %2 : f32 to vector<16x128xf32>
    %16 = arith.mulf %15, %14 : vector<16x128xf32>
    %cst_12 = arith.constant 1.000000e+00 : f32
    %17 = arith.subf %cst_12, %2 : f32
    %18 = vector.broadcast %17 : f32 to vector<16x128xf32>
    %19 = arith.mulf %18, %6 : vector<16x128xf32>
    %20 = arith.mulf %19, %6 : vector<16x128xf32>
    %21 = arith.addf %16, %20 : vector<16x128xf32>
    %c0_13 = arith.constant 0 : index
    %c0_14 = arith.constant 0 : index
    %22 = vector.load %arg6[%c0_13, %c0_14] : memref<16x128xf32, #tpu.memory_space<vmem>>, vector<16x128xf32>
    tpu.vector_store %arg6[%c0_13, %c0_14], %13 {strides = array<i32>} : memref<16x128xf32, #tpu.memory_space<vmem>>, vector<16x128xf32>,
    %c0_15 = arith.constant 0 : index
    %c0_16 = arith.constant 0 : index
    %23 = vector.load %arg7[%c0_15, %c0_16] : memref<16x128xf32, #tpu.memory_space<vmem>>, vector<16x128xf32>
    tpu.vector_store %arg7[%c0_15, %c0_16], %21 {strides = array<i32>} : memref<16x128xf32, #tpu.memory_space<vmem>>, vector<16x128xf32>,
    %24 = vector.broadcast %5 : f32 to vector<16x128xf32>
    %25 = arith.mulf %21, %24 : vector<16x128xf32>
    %26 = math.sqrt %25 : vector<16x128xf32>
    %27 = vector.broadcast %3 : f32 to vector<16x128xf32>
    %28 = arith.addf %26, %27 : vector<16x128xf32>
    %c0_17 = arith.constant 0 : index
    %c0_18 = arith.constant 0 : index
    %29 = vector.load %arg5[%c0_17, %c0_18] : memref<16x128xf32, #tpu.memory_space<vmem>>, vector<16x128xf32>
    %30 = vector.broadcast %4 : f32 to vector<16x128xf32>
    %31 = arith.mulf %13, %30 : vector<16x128xf32>
    %32 = vector.broadcast %0 : f32 to vector<16x128xf32>
    %33 = arith.mulf %32, %31 : vector<16x128xf32>
    %34 = tpu.reciprocal %28 {approx = true} : vector<16x128xf32> -> vector<16x128xf32>
    %35 = arith.mulf %33, %34 : vector<16x128xf32>
    %36 = arith.subf %29, %35 : vector<16x128xf32>
    %c0_19 = arith.constant 0 : index
    %c0_20 = arith.constant 0 : index
    %37 = vector.load %arg8[%c0_19, %c0_20] : memref<16x128xf32, #tpu.memory_space<vmem>>, vector<16x128xf32>
    tpu.vector_store %arg8[%c0_19, %c0_20], %36 {strides = array<i32>} : memref<16x128xf32, #tpu.memory_space<vmem>>, vector<16x128xf32>,
    return
  }
  func.func @transform_0(%arg0: i32) -> (i32, i32) {
    %c0_i32 = arith.constant 0 : i32
    %c0_i32_0 = arith.constant 0 : i32
    %c0_i32_1 = arith.constant 0 : i32
    return %c0_i32, %c0_i32_0 : i32, i32
  }
  func.func @transform_1(%arg0: i32) -> (i32, i32) {
    %c0_i32 = arith.constant 0 : i32
    %c0_i32_0 = arith.constant 0 : i32
    return %arg0, %c0_i32 : i32, i32
  }
  func.func @transform_2(%arg0: i32) -> (i32, i32) {
    %c0_i32 = arith.constant 0 : i32
    %c0_i32_0 = arith.constant 0 : i32
    return %arg0, %c0_i32 : i32, i32
  }
  func.func @transform_3(%arg0: i32) -> (i32, i32) {
    %c0_i32 = arith.constant 0 : i32
    %c0_i32_0 = arith.constant 0 : i32
    return %arg0, %c0_i32 : i32, i32
  }
  func.func @transform_4(%arg0: i32) -> (i32, i32) {
    %c0_i32 = arith.constant 0 : i32
    %c0_i32_0 = arith.constant 0 : i32
    return %arg0, %c0_i32 : i32, i32
  }
  func.func @transform_5(%arg0: i32) -> (i32, i32) {
    %c0_i32 = arith.constant 0 : i32
    %c0_i32_0 = arith.constant 0 : i32
    return %arg0, %c0_i32 : i32, i32
  }
  func.func @transform_6(%arg0: i32) -> (i32, i32) {
    %c0_i32 = arith.constant 0 : i32
    %c0_i32_0 = arith.constant 0 : i32
    return %arg0, %c0_i32 : i32, i32
  }
  func.func @transform_7(%arg0: i32) -> (i32, i32) {
    %c0_i32 = arith.constant 0 : i32
    %c0_i32_0 = arith.constant 0 : i32
    return %arg0, %c0_i32 : i32, i32
  }
}

</mosaic_0001>

<llo_original>
// kernel: custom-call.2
$region0: #{custom-call.2}
  %s0 = inlined_call_operand.hbm [shape: f32[32,64], index: 0, kind: output, shape index: {}]

// kernel: custom-call.1
$region0: #{custom-call.1}
  %s0 = inlined_call_operand.hbm [shape: c64[64,128], index: 0, kind: input, shape index: {}]
  %s1 = inlined_call_operand.vmem [shape: f32[64,128], index: 1, kind: output, shape index: {}]
  %s2 = scalar_lea.hbm %s0, 64
  $region1: #{custom-call.1} parent=0
    #allocation0 [shape = 's32[1]{0}', space=sflag, size = 0x4, scoped, tag = 'scoped memory for custom-call.1']
    %3 = vsyncpa [#allocation0], 0
    %s5 = sshll.u32 %s2, 4
    %s6 = int_to_ptr.hbm [resolvable:$true] %s5
    %s7 = sshll.u32 %s1, 4
    %s8 = int_to_ptr.vmem [resolvable:$true] %s7
    %10 = dma.hbm_to_vmem [thread:$0]  %s6, 1024, %s8, [#allocation0]
    %12 = dma.done [#allocation0], 1024
    %13 = vsyncpa [#allocation0], 1

// kernel: custom-call
$region0: #{custom-call}
  %s0 = inlined_call_operand.hbm [shape: c64[64,128], index: 0, kind: input, shape index: {}]
  %s1 = inlined_call_operand.vmem [shape: f32[64,128], index: 1, kind: output, shape index: {}]
  $region1: #{custom-call} parent=0
    #allocation0 [shape = 's32[1]{0}', space=sflag, size = 0x4, scoped, tag = 'scoped memory for custom-call']
    %2 = vsyncpa [#allocation0], 0
    %s4 = sshll.u32 %s0, 4
    %s5 = int_to_ptr.hbm [resolvable:$true] %s4
    %s6 = sshll.u32 %s1, 4
    %s7 = int_to_ptr.vmem [resolvable:$true] %s6
    %9 = dma.hbm_to_vmem [thread:$0]  %s5, 1024, %s7, [#allocation0]
    %11 = dma.done [#allocation0], 1024
    %12 = vsyncpa [#allocation0], 1

// kernel: jvp__.22
$region0: #{jvp__.22}
  #allocation0 [shape = 'u32[]', space=smem, size = 0x4, offset = 0x4, fixed_abs, tag = 'smem constant byte address 0x4 - core index']
  #allocation1 [shape = 'u32[72,128]{1,0:T(1,128)}', space=vmem, size = 0x9000, scoped, tag = 'internal scratch']
  %s0 = inlined_call_operand.vmem [shape: f32[16,128], index: 0, kind: input, shape index: {}]
  %s1 = inlined_call_operand.vmem [shape: f32[16,128], index: 1, kind: output, shape index: {0}]
  %s2 = inlined_call_operand.vmem [shape: f32[16,128], index: 2, kind: output, shape index: {1}]
  %3 = xla_tuple %s1, %s2
  %s4 = sld [smem:[#allocation0]]
  $region22: #{jvp__.22} parent=0
    _
  %s6 = ssub.s32 1, %s4
  %s7 = scalar_select 0, %s6, %s4
  // Predicated region
  $region2: #{jvp__.22} parent=0 // pred_check
    _
  $region3: #{jvp__.22} parent=0 // pred_check_branch
    %9 = sbr.rel (0) target = $region5
  $region4: #{jvp__.22} parent=0 // pred_region
    _
  $region5: #{jvp__.22} parent=0 // pred_fallthru
    _
  %v10 = vld [vmem:[%s0] sm:$0xff]
  %v11 = vld [vmem:[%s0 + $0x8] sm:$0xff]
  %v12 = vand.u32 2147483647, %v10
  %vm13 = vcmp.le.f32.partialorder %v12, 0.7853982
  %vm14 = vcmp.lt.s32.totalorder %v10, 0
  %v15 = vand.u32 %v10, 2139095040
  %v16 = vshrl.u32 %v15, 23
  %v17 = vsub.s32 %v16, 127
  %v18 = vand.u32 2147483647, %v10
  %v19 = vand.u32 %v18, 8388607
  %v20 = vor.u32 %v19, 8388608
  %v21 = vsub.s32 0, %v20
  %v22 = vadd.s32 %v17, 1
  %vm23 = vcmp.gt.s32.totalorder %v22, 0
  %v24 = vsel %vm23, %v22, 0
  %v25 = vshrl.u32 %v24, 5
  %v26 = vand.u32 %v24, 31
  %v27 = vsub.s32 32, %v26
  %v28 = vshrl.u32 683565275, %v27
  %v29 = vshll.u32 683565275, %v26
  %v30 = vshrl.u32 2475754826, %v27
  %v31 = vor.u32 %v29, %v30
  %v32 = vshll.u32 2475754826, %v26
  %v33 = vshrl.u32 2131351028, %v27
  %v34 = vor.u32 %v32, %v33
  %v35 = vshll.u32 2131351028, %v26
  %v36 = vshrl.u32 2102212464, %v27
  %v37 = vor.u32 %v35, %v36
  %v38 = vshll.u32 2102212464, %v26
  %v39 = vshrl.u32 920167782, %v27
  %v40 = vor.u32 %v38, %v39
  %v41 = vshll.u32 920167782, %v26
  %v42 = vshrl.u32 1326507024, %v27
  %v43 = vor.u32 %v41, %v42
  %vm44 = vcmp.lt.s32.totalorder %v25, 1
  %vm45 = vcmp.lt.s32.totalorder %v25, 2
  %vm46 = vcmp.lt.s32.totalorder %v25, 3
  %vm47 = vcmp.lt.s32.totalorder %v25, 4
  %v48 = vsel %vm44, %v28, %v31
  %v49 = vsel %vm47, %v37, 2102212464
  %v50 = vsel %vm46, %v34, %v49
  %v51 = vsel %vm45, %v48, %v50
  %v52 = vsel %vm44, %v31, %v34
  %v53 = vsel %vm47, %v40, 920167782
  %v54 = vsel %vm46, %v37, %v53
  %v55 = vsel %vm45, %v52, %v54
  %v56 = vsel %vm44, %v34, %v37
  %v57 = vsel %vm47, %v43, 1326507024
  %v58 = vsel %vm46, %v40, %v57
  %v59 = vsel %vm45, %v56, %v58
  %v60 = vshll.u32 %v20, 8
  %v61 = vand.u32 %v60, 65535
  %v62 = vshrl.u32 %v60, 16
  %v63 = vand.u32 %v59, 65535
  %v64 = vshrl.u32 %v59, 16
  %v65 = vmul.u32 %v61, %v63
  %v66 = vmul.u32 %v61, %v64
  %v67 = vmul.u32 %v62, %v63
  %v68 = vmul.u32 %v62, %v64
  %v69 = vshll.u32 %v66, 16
  %v70 = vshrl.u32 %v66, 16
  %v71 = vshll.u32 %v67, 16
  %v72 = vshrl.u32 %v67, 16
  %vm73 = vc.u32 %v65, %v69
  %v74 = vsel %vm73, 1, 0
  %v75 = vadd.s32 %v65, %v69
  %v76 = vadd.s32 %v68, %v74
  %vm77 = vc.u32 %v75, %v71
  %v78 = vsel %vm77, 1, 0
  %v79 = vadd.s32 %v75, %v71
  %v80 = vadd.s32 %v76, %v78
  %v81 = vadd.s32 %v80, %v70
  %v82 = vadd.s32 %v81, %v72
  %v83 = vand.u32 %v60, 65535
  %v84 = vshrl.u32 %v60, 16
  %v85 = vand.u32 %v55, 65535
  %v86 = vshrl.u32 %v55, 16
  %v87 = vmul.u32 %v83, %v85
  %v88 = vmul.u32 %v83, %v86
  %v89 = vmul.u32 %v84, %v85
  %v90 = vmul.u32 %v84, %v86
  %v91 = vshll.u32 %v88, 16
  %v92 = vshrl.u32 %v88, 16
  %v93 = vshll.u32 %v89, 16
  %v94 = vshrl.u32 %v89, 16
  %vm95 = vc.u32 %v87, %v91
  %v96 = vsel %vm95, 1, 0
  %v97 = vadd.s32 %v87, %v91
  %v98 = vadd.s32 %v90, %v96
  %vm99 = vc.u32 %v97, %v93
  %v100 = vsel %vm99, 1, 0
  %v101 = vadd.s32 %v97, %v93
  %v102 = vadd.s32 %v98, %v100
  %v103 = vadd.s32 %v102, %v92
  %v104 = vadd.s32 %v103, %v94
  %v105 = vmul.u32 %v60, %v51
  %v106 = vadd.s32 %v82, %v101
  %vm107 = vc.u32 %v82, %v101
  %v108 = vadd.s32 %v104, 1
  %v109 = vsel %vm107, %v108, %v104
  %v110 = vadd.s32 %v105, %v109
  %v111 = vadd.s32 %v110, 536870912
  %v112 = vshrl.u32 %v111, 30
  %v113 = vshll.u32 %v112, 30
  %v114 = vsub.s32 %v110, %v113
  %vm115 = vcmp.lt.s32.totalorder %v114, 0
  %v116 = vsub.s32 0, %v114
  %v117 = vsel %vm115, %v116, %v114
  %v118 = vclz %v117
  %v119 = vsub.s32 %v118, 2
  %vm120 = vcmp.gt.s32.totalorder 0, %v119
  %v121 = vsel %vm120, 0, %v119
  %v122 = vsub.s32 32, %v121
  %v123 = vshll.u32 %v114, %v121
  %v124 = vshrl.u32 %v106, %v122
  %v125 = vor.u32 %v123, %v124
  %v126 = vsub.s32 4294967266, %v121
  %v127 = vadd.s32 %v126, 127
  %v128 = vshll.u32 %v127, 23
  %v129 = vor.u32 4788187, %v128
  %v130 = vand.u32 2147483647, %v129
  %v132 = vcvt.s32.f32 %v125
  %v133 = vmul.f32 %v132, %v130
  %v134 = vxor.u32 %v133, 2147483648
  %v135 = vsel %vm14, %v134, %v133
  %v136 = vsub.s32 4, %v112
  %v137 = vsel %vm14, %v136, %v112
  %v138 = vsel %vm13, %v10, %v135
  %v139 = vsel %vm13, 0, %v137
  %v140 = vmul.f32 %v138, %v138
  %v141 = vmul.f32 %v140, -0.001358992
  %v142 = vadd.f32 %v141, 0.041655596
  %v143 = vmul.f32 %v140, %v142
  %v144 = vadd.f32 %v143, -0.4999988
  %v145 = vmul.f32 %v140, %v144
  %v146 = vadd.f32 1.0, %v145
  %v147 = vmul.f32 %v138, %v138
  %v148 = vmul.f32 %v147, -0.00019511016
  %v149 = vadd.f32 %v148, 0.008332121
  %v150 = vmul.f32 %v147, %v149
  %v151 = vadd.f32 %v150, -0.16666654
  %v152 = vmul.f32 %v147, %v151
  %v153 = vadd.f32 %v152, 1.0
  %v154 = vmul.f32 %v153, %v138
  %vm155 = vweird.f32 %v10
  %v156 = vand.u32 %v139, 3
  %vm157 = vcmp.lt.s32.totalorder %v156, 2
  %vm158 = vcmp.eq.s32.totalorder %v156, 0
  %v159 = vxor.u32 %v154, 2147483648
  %v160 = vsel %vm158, %v146, %v159
  %vm161 = vcmp.eq.s32.totalorder %v156, 2
  %v162 = vxor.u32 %v146, 2147483648
  %v163 = vsel %vm161, %v162, %v154
  %v164 = vsel %vm157, %v160, %v163
  %v165 = vsel %vm155, nan, %v164
  %v166 = vand.u32 2147483647, %v11
  %vm167 = vcmp.le.f32.partialorder %v166, 0.7853982
  %vm168 = vcmp.lt.s32.totalorder %v11, 0
  %v169 = vand.u32 %v11, 2139095040
  %v170 = vshrl.u32 %v169, 23
  %v171 = vsub.s32 %v170, 127
  %v172 = vand.u32 2147483647, %v11
  %v173 = vand.u32 %v172, 8388607
  %v174 = vor.u32 %v173, 8388608
  %v175 = vsub.s32 0, %v174
  %v176 = vadd.s32 %v171, 1
  %vm177 = vcmp.gt.s32.totalorder %v176, 0
  %v178 = vsel %vm177, %v176, 0
  %v179 = vshrl.u32 %v178, 5
  %v180 = vand.u32 %v178, 31
  %v181 = vsub.s32 32, %v180
  %v182 = vshrl.u32 683565275, %v181
  %v183 = vshll.u32 683565275, %v180
  %v184 = vshrl.u32 2475754826, %v181
  %v185 = vor.u32 %v183, %v184
  %v186 = vshll.u32 2475754826, %v180
  %v187 = vshrl.u32 2131351028, %v181
  %v188 = vor.u32 %v186, %v187
  %v189 = vshll.u32 2131351028, %v180
  %v190 = vshrl.u32 2102212464, %v181
  %v191 = vor.u32 %v189, %v190
  %v192 = vshll.u32 2102212464, %v180
  %v193 = vshrl.u32 920167782, %v181
  %v194 = vor.u32 %v192, %v193
  %v195 = vshll.u32 920167782, %v180
  %v196 = vshrl.u32 1326507024, %v181
  %v197 = vor.u32 %v195, %v196
  %vm198 = vcmp.lt.s32.totalorder %v179, 1
  %vm199 = vcmp.lt.s32.totalorder %v179, 2
  %vm200 = vcmp.lt.s32.totalorder %v179, 3
  %vm201 = vcmp.lt.s32.totalorder %v179, 4
  %v202 = vsel %vm198, %v182, %v185
  %v203 = vsel %vm201, %v191, 2102212464
  %v204 = vsel %vm200, %v188, %v203
  %v205 = vsel %vm199, %v202, %v204
  %v206 = vsel %vm198, %v185, %v188
  %v207 = vsel %vm201, %v194, 920167782
  %v208 = vsel %vm200, %v191, %v207
  %v209 = vsel %vm199, %v206, %v208
  %v210 = vsel %vm198, %v188, %v191
  %v211 = vsel %vm201, %v197, 1326507024
  %v212 = vsel %vm200, %v194, %v211
  %v213 = vsel %vm199, %v210, %v212
  %v214 = vshll.u32 %v174, 8
  %v215 = vand.u32 %v214, 65535
  %v216 = vshrl.u32 %v214, 16
  %v217 = vand.u32 %v213, 65535
  %v218 = vshrl.u32 %v213, 16
  %v219 = vmul.u32 %v215, %v217
  %v220 = vmul.u32 %v215, %v218
  %v221 = vmul.u32 %v216, %v217
  %v222 = vmul.u32 %v216, %v218
  %v223 = vshll.u32 %v220, 16
  %v224 = vshrl.u32 %v220, 16
  %v225 = vshll.u32 %v221, 16
  %v226 = vshrl.u32 %v221, 16
  %vm227 = vc.u32 %v219, %v223
  %v228 = vsel %vm227, 1, 0
  %v229 = vadd.s32 %v219, %v223
  %v230 = vadd.s32 %v222, %v228
  %vm231 = vc.u32 %v229, %v225
  %v232 = vsel %vm231, 1, 0
  %v233 = vadd.s32 %v229, %v225
  %v234 = vadd.s32 %v230, %v232
  %v235 = vadd.s32 %v234, %v224
  %v236 = vadd.s32 %v235, %v226
  %v237 = vand.u32 %v214, 65535
  %v238 = vshrl.u32 %v214, 16
  %v239 = vand.u32 %v209, 65535
  %v240 = vshrl.u32 %v209, 16
  %v241 = vmul.u32 %v237, %v239
  %v242 = vmul.u32 %v237, %v240
  %v243 = vmul.u32 %v238, %v239
  %v244 = vmul.u32 %v238, %v240
  %v245 = vshll.u32 %v242, 16
  %v246 = vshrl.u32 %v242, 16
  %v247 = vshll.u32 %v243, 16
  %v248 = vshrl.u32 %v243, 16
  %vm249 = vc.u32 %v241, %v245
  %v250 = vsel %vm249, 1, 0
  %v251 = vadd.s32 %v241, %v245
  %v252 = vadd.s32 %v244, %v250
  %vm253 = vc.u32 %v251, %v247
  %v254 = vsel %vm253, 1, 0
  %v255 = vadd.s32 %v251, %v247
  %v256 = vadd.s32 %v252, %v254
  %v257 = vadd.s32 %v256, %v246
  %v258 = vadd.s32 %v257, %v248
  %v259 = vmul.u32 %v214, %v205
  %v260 = vadd.s32 %v236, %v255
  %vm261 = vc.u32 %v236, %v255
  %v262 = vadd.s32 %v258, 1
  %v263 = vsel %vm261, %v262, %v258
  %v264 = vadd.s32 %v259, %v263
  %v265 = vadd.s32 %v264, 536870912
  %v266 = vshrl.u32 %v265, 30
  %v267 = vshll.u32 %v266, 30
  %v268 = vsub.s32 %v264, %v267
  %vm269 = vcmp.lt.s32.totalorder %v268, 0
  %v270 = vsub.s32 0, %v268
  %v271 = vsel %vm269, %v270, %v268
  %v272 = vclz %v271
  %v273 = vsub.s32 %v272, 2
  %vm274 = vcmp.gt.s32.totalorder 0, %v273
  %v275 = vsel %vm274, 0, %v273
  %v276 = vsub.s32 32, %v275
  %v277 = vshll.u32 %v268, %v275
  %v278 = vshrl.u32 %v260, %v276
  %v279 = vor.u32 %v277, %v278
  %v280 = vsub.s32 4294967266, %v275
  %v281 = vadd.s32 %v280, 127
  %v282 = vshll.u32 %v281, 23
  %v283 = vor.u32 4788187, %v282
  %v284 = vand.u32 2147483647, %v283
  %v286 = vcvt.s32.f32 %v279
  %v287 = vmul.f32 %v286, %v284
  %v288 = vxor.u32 %v287, 2147483648
  %v289 = vsel %vm168, %v288, %v287
  %v290 = vsub.s32 4, %v266
  %v291 = vsel %vm168, %v290, %v266
  %v292 = vsel %vm167, %v11, %v289
  %v293 = vsel %vm167, 0, %v291
  %v294 = vmul.f32 %v292, %v292
  %v295 = vmul.f32 %v294, -0.001358992
  %v296 = vadd.f32 %v295, 0.041655596
  %v297 = vmul.f32 %v294, %v296
  %v298 = vadd.f32 %v297, -0.4999988
  %v299 = vmul.f32 %v294, %v298
  %v300 = vadd.f32 1.0, %v299
  %v301 = vmul.f32 %v292, %v292
  %v302 = vmul.f32 %v301, -0.00019511016
  %v303 = vadd.f32 %v302, 0.008332121
  %v304 = vmul.f32 %v301, %v303
  %v305 = vadd.f32 %v304, -0.16666654
  %v306 = vmul.f32 %v301, %v305
  %v307 = vadd.f32 %v306, 1.0
  %v308 = vmul.f32 %v307, %v292
  %vm309 = vweird.f32 %v11
  %v310 = vand.u32 %v293, 3
  %vm311 = vcmp.lt.s32.totalorder %v310, 2
  %vm312 = vcmp.eq.s32.totalorder %v310, 0
  %v313 = vxor.u32 %v308, 2147483648
  %v314 = vsel %vm312, %v300, %v313
  %vm315 = vcmp.eq.s32.totalorder %v310, 2
  %v316 = vxor.u32 %v300, 2147483648
  %v317 = vsel %vm315, %v316, %v308
  %v318 = vsel %vm311, %v314, %v317
  %v319 = vsel %vm309, nan, %v318
  %320 = vst [vmem:[%s1] sm:$0xff] %v165
  %321 = vst [vmem:[%s1 + $0x8] sm:$0xff] %v319
  %v322 = vand.u32 2147483647, %v10
  %vm323 = vcmp.le.f32.partialorder %v322, 0.7853982
  %vm324 = vcmp.lt.s32.totalorder %v10, 0
  %v325 = vand.u32 %v10, 2139095040
  %v326 = vshrl.u32 %v325, 23
  %v327 = vsub.s32 %v326, 127
  %v328 = vand.u32 2147483647, %v10
  %v329 = vand.u32 %v328, 8388607
  %v330 = vor.u32 %v329, 8388608
  %v331 = vsub.s32 0, %v330
  %v332 = vadd.s32 %v327, 1
  %vm333 = vcmp.gt.s32.totalorder %v332, 0
  %v334 = vsel %vm333, %v332, 0
  %v335 = vshrl.u32 %v334, 5
  %v336 = vand.u32 %v334, 31
  %v337 = vsub.s32 32, %v336
  %v338 = vshrl.u32 683565275, %v337
  %v339 = vshll.u32 683565275, %v336
  %v340 = vshrl.u32 2475754826, %v337
  %v341 = vor.u32 %v339, %v340
  %v342 = vshll.u32 2475754826, %v336
  %v343 = vshrl.u32 2131351028, %v337
  %v344 = vor.u32 %v342, %v343
  %v345 = vshll.u32 2131351028, %v336
  %v346 = vshrl.u32 2102212464, %v337
  %v347 = vor.u32 %v345, %v346
  %v348 = vshll.u32 2102212464, %v336
  %v349 = vshrl.u32 920167782, %v337
  %v350 = vor.u32 %v348, %v349
  %v351 = vshll.u32 920167782, %v336
  %v352 = vshrl.u32 1326507024, %v337
  %v353 = vor.u32 %v351, %v352
  %vm354 = vcmp.lt.s32.totalorder %v335, 1
  %vm355 = vcmp.lt.s32.totalorder %v335, 2
  %vm356 = vcmp.lt.s32.totalorder %v335, 3
  %vm357 = vcmp.lt.s32.totalorder %v335, 4
  %v358 = vsel %vm354, %v338, %v341
  %v359 = vsel %vm357, %v347, 2102212464
  %v360 = vsel %vm356, %v344, %v359
  %v361 = vsel %vm355, %v358, %v360
  %v362 = vsel %vm354, %v341, %v344
  %v363 = vsel %vm357, %v350, 920167782
  %v364 = vsel %vm356, %v347, %v363
  %v365 = vsel %vm355, %v362, %v364
  %v366 = vsel %vm354, %v344, %v347
  %v367 = vsel %vm357, %v353, 1326507024
  %v368 = vsel %vm356, %v350, %v367
  %v369 = vsel %vm355, %v366, %v368
  %v370 = vshll.u32 %v330, 8
  %v371 = vand.u32 %v370, 65535
  %v372 = vshrl.u32 %v370, 16
  %v373 = vand.u32 %v369, 65535
  %v374 = vshrl.u32 %v369, 16
  %v375 = vmul.u32 %v371, %v373
  %v376 = vmul.u32 %v371, %v374
  %v377 = vmul.u32 %v372, %v373
  %v378 = vmul.u32 %v372, %v374
  %v379 = vshll.u32 %v376, 16
  %v380 = vshrl.u32 %v376, 16
  %v381 = vshll.u32 %v377, 16
  %v382 = vshrl.u32 %v377, 16
  %vm383 = vc.u32 %v375, %v379
  %v384 = vsel %vm383, 1, 0
  %v385 = vadd.s32 %v375, %v379
  %v386 = vadd.s32 %v378, %v384
  %vm387 = vc.u32 %v385, %v381
  %v388 = vsel %vm387, 1, 0
  %v389 = vadd.s32 %v385, %v381
  %v390 = vadd.s32 %v386, %v388
  %v391 = vadd.s32 %v390, %v380
  %v392 = vadd.s32 %v391, %v382
  %v393 = vand.u32 %v370, 65535
  %v394 = vshrl.u32 %v370, 16
  %v395 = vand.u32 %v365, 65535
  %v396 = vshrl.u32 %v365, 16
  %v397 = vmul.u32 %v393, %v395
  %v398 = vmul.u32 %v393, %v396
  %v399 = vmul.u32 %v394, %v395
  %v400 = vmul.u32 %v394, %v396
  %v401 = vshll.u32 %v398, 16
  %v402 = vshrl.u32 %v398, 16
  %v403 = vshll.u32 %v399, 16
  %v404 = vshrl.u32 %v399, 16
  %vm405 = vc.u32 %v397, %v401
  %v406 = vsel %vm405, 1, 0
  %v407 = vadd.s32 %v397, %v401
  %v408 = vadd.s32 %v400, %v406
  %vm409 = vc.u32 %v407, %v403
  %v410 = vsel %vm409, 1, 0
  %v411 = vadd.s32 %v407, %v403
  %v412 = vadd.s32 %v408, %v410
  %v413 = vadd.s32 %v412, %v402
  %v414 = vadd.s32 %v413, %v404
  %v415 = vmul.u32 %v370, %v361
  %v416 = vadd.s32 %v392, %v411
  %vm417 = vc.u32 %v392, %v411
  %v418 = vadd.s32 %v414, 1
  %v419 = vsel %vm417, %v418, %v414
  %v420 = vadd.s32 %v415, %v419
  %v421 = vadd.s32 %v420, 536870912
  %v422 = vshrl.u32 %v421, 30
  %v423 = vshll.u32 %v422, 30
  %v424 = vsub.s32 %v420, %v423
  %vm425 = vcmp.lt.s32.totalorder %v424, 0
  %v426 = vsub.s32 0, %v424
  %v427 = vsel %vm425, %v426, %v424
  %v428 = vclz %v427
  %v429 = vsub.s32 %v428, 2
  %vm430 = vcmp.gt.s32.totalorder 0, %v429
  %v431 = vsel %vm430, 0, %v429
  %v432 = vsub.s32 32, %v431
  %v433 = vshll.u32 %v424, %v431
  %v434 = vshrl.u32 %v416, %v432
  %v435 = vor.u32 %v433, %v434
  %v436 = vsub.s32 4294967266, %v431
  %v437 = vadd.s32 %v436, 127
  %v438 = vshll.u32 %v437, 23
  %v439 = vor.u32 4788187, %v438
  %v440 = vand.u32 2147483647, %v439
  %v442 = vcvt.s32.f32 %v435
  %v443 = vmul.f32 %v442, %v440
  %v444 = vxor.u32 %v443, 2147483648
  %v445 = vsel %vm324, %v444, %v443
  %v446 = vsub.s32 4, %v422
  %v447 = vsel %vm324, %v446, %v422
  %v448 = vsel %vm323, %v10, %v445
  %v449 = vsel %vm323, 0, %v447
  %v450 = vmul.f32 %v448, %v448
  %v451 = vmul.f32 %v450, -0.001358992
  %v452 = vadd.f32 %v451, 0.041655596
  %v453 = vmul.f32 %v450, %v452
  %v454 = vadd.f32 %v453, -0.4999988
  %v455 = vmul.f32 %v450, %v454
  %v456 = vadd.f32 1.0, %v455
  %v457 = vmul.f32 %v448, %v448
  %v458 = vmul.f32 %v457, -0.00019511016
  %v459 = vadd.f32 %v458, 0.008332121
  %v460 = vmul.f32 %v457, %v459
  %v461 = vadd.f32 %v460, -0.16666654
  %v462 = vmul.f32 %v457, %v461
  %v463 = vadd.f32 %v462, 1.0
  %v464 = vmul.f32 %v463, %v448
  %vm465 = vweird.f32 %v10
  %v466 = vadd.s32 %v449, 3
  %v467 = vand.u32 %v466, 3
  %vm468 = vcmp.lt.s32.totalorder %v467, 2
  %vm469 = vcmp.eq.s32.totalorder %v467, 0
  %v470 = vxor.u32 %v464, 2147483648
  %v471 = vsel %vm469, %v456, %v470
  %vm472 = vcmp.eq.s32.totalorder %v467, 2
  %v473 = vxor.u32 %v456, 2147483648
  %v474 = vsel %vm472, %v473, %v464
  %v475 = vsel %vm468, %v471, %v474
  %v476 = vsel %vm465, nan, %v475
  %v477 = vand.u32 2147483647, %v11
  %vm478 = vcmp.le.f32.partialorder %v477, 0.7853982
  %vm479 = vcmp.lt.s32.totalorder %v11, 0
  %v480 = vand.u32 %v11, 2139095040
  %v481 = vshrl.u32 %v480, 23
  %v482 = vsub.s32 %v481, 127
  %v483 = vand.u32 2147483647, %v11
  %v484 = vand.u32 %v483, 8388607
  %v485 = vor.u32 %v484, 8388608
  %v486 = vsub.s32 0, %v485
  %v487 = vadd.s32 %v482, 1
  %vm488 = vcmp.gt.s32.totalorder %v487, 0
  %v489 = vsel %vm488, %v487, 0
  %v490 = vshrl.u32 %v489, 5
  %v491 = vand.u32 %v489, 31
  %v492 = vsub.s32 32, %v491
  %v493 = vshrl.u32 683565275, %v492
  %v494 = vshll.u32 683565275, %v491
  %v495 = vshrl.u32 2475754826, %v492
  %v496 = vor.u32 %v494, %v495
  %v497 = vshll.u32 2475754826, %v491
  %v498 = vshrl.u32 2131351028, %v492
  %v499 = vor.u32 %v497, %v498
  %v500 = vshll.u32 2131351028, %v491
  %v501 = vshrl.u32 2102212464, %v492
  %v502 = vor.u32 %v500, %v501
  %v503 = vshll.u32 2102212464, %v491
  %v504 = vshrl.u32 920167782, %v492
  %v505 = vor.u32 %v503, %v504
  %v506 = vshll.u32 920167782, %v491
  %v507 = vshrl.u32 1326507024, %v492
  %v508 = vor.u32 %v506, %v507
  %vm509 = vcmp.lt.s32.totalorder %v490, 1
  %vm510 = vcmp.lt.s32.totalorder %v490, 2
  %vm511 = vcmp.lt.s32.totalorder %v490, 3
  %vm512 = vcmp.lt.s32.totalorder %v490, 4
  %v513 = vsel %vm509, %v493, %v496
  %v514 = vsel %vm512, %v502, 2102212464
  %v515 = vsel %vm511, %v499, %v514
  %v516 = vsel %vm510, %v513, %v515
  %v517 = vsel %vm509, %v496, %v499
  %v518 = vsel %vm512, %v505, 920167782
  %v519 = vsel %vm511, %v502, %v518
  %v520 = vsel %vm510, %v517, %v519
  %v521 = vsel %vm509, %v499, %v502
  %v522 = vsel %vm512, %v508, 1326507024
  %v523 = vsel %vm511, %v505, %v522
  %v524 = vsel %vm510, %v521, %v523
  %v525 = vshll.u32 %v485, 8
  %v526 = vand.u32 %v525, 65535
  %v527 = vshrl.u32 %v525, 16
  %v528 = vand.u32 %v524, 65535
  %v529 = vshrl.u32 %v524, 16
  %v530 = vmul.u32 %v526, %v528
  %v531 = vmul.u32 %v526, %v529
  %v532 = vmul.u32 %v527, %v528
  %v533 = vmul.u32 %v527, %v529
  %v534 = vshll.u32 %v531, 16
  %v535 = vshrl.u32 %v531, 16
  %v536 = vshll.u32 %v532, 16
  %v537 = vshrl.u32 %v532, 16
  %vm538 = vc.u32 %v530, %v534
  %v539 = vsel %vm538, 1, 0
  %v540 = vadd.s32 %v530, %v534
  %v541 = vadd.s32 %v533, %v539
  %vm542 = vc.u32 %v540, %v536
  %v543 = vsel %vm542, 1, 0
  %v544 = vadd.s32 %v540, %v536
  %v545 = vadd.s32 %v541, %v543
  %v546 = vadd.s32 %v545, %v535
  %v547 = vadd.s32 %v546, %v537
  %v548 = vand.u32 %v525, 65535
  %v549 = vshrl.u32 %v525, 16
  %v550 = vand.u32 %v520, 65535
  %v551 = vshrl.u32 %v520, 16
  %v552 = vmul.u32 %v548, %v550
  %v553 = vmul.u32 %v548, %v551
  %v554 = vmul.u32 %v549, %v550
  %v555 = vmul.u32 %v549, %v551
  %v556 = vshll.u32 %v553, 16
  %v557 = vshrl.u32 %v553, 16
  %v558 = vshll.u32 %v554, 16
  %v559 = vshrl.u32 %v554, 16
  %vm560 = vc.u32 %v552, %v556
  %v561 = vsel %vm560, 1, 0
  %v562 = vadd.s32 %v552, %v556
  %v563 = vadd.s32 %v555, %v561
  %vm564 = vc.u32 %v562, %v558
  %v565 = vsel %vm564, 1, 0
  %v566 = vadd.s32 %v562, %v558
  %v567 = vadd.s32 %v563, %v565
  %v568 = vadd.s32 %v567, %v557
  %v569 = vadd.s32 %v568, %v559
  %v570 = vmul.u32 %v525, %v516
  %v571 = vadd.s32 %v547, %v566
  %vm572 = vc.u32 %v547, %v566
  %v573 = vadd.s32 %v569, 1
  %v574 = vsel %vm572, %v573, %v569
  %v575 = vadd.s32 %v570, %v574
  %v576 = vadd.s32 %v575, 536870912
  %v577 = vshrl.u32 %v576, 30
  %v578 = vshll.u32 %v577, 30
  %v579 = vsub.s32 %v575, %v578
  %vm580 = vcmp.lt.s32.totalorder %v579, 0
  %v581 = vsub.s32 0, %v579
  %v582 = vsel %vm580, %v581, %v579
  %v583 = vclz %v582
  %v584 = vsub.s32 %v583, 2
  %vm585 = vcmp.gt.s32.totalorder 0, %v584
  %v586 = vsel %vm585, 0, %v584
  %v587 = vsub.s32 32, %v586
  %v588 = vshll.u32 %v579, %v586
  %v589 = vshrl.u32 %v571, %v587
  %v590 = vor.u32 %v588, %v589
  %v591 = vsub.s32 4294967266, %v586
  %v592 = vadd.s32 %v591, 127
  %v593 = vshll.u32 %v592, 23
  %v594 = vor.u32 4788187, %v593
  %v595 = vand.u32 2147483647, %v594
  %v597 = vcvt.s32.f32 %v590
  %v598 = vmul.f32 %v597, %v595
  %v599 = vxor.u32 %v598, 2147483648
  %v600 = vsel %vm479, %v599, %v598
  %v601 = vsub.s32 4, %v577
  %v602 = vsel %vm479, %v601, %v577
  %v603 = vsel %vm478, %v11, %v600
  %v604 = vsel %vm478, 0, %v602
  %v605 = vmul.f32 %v603, %v603
  %v606 = vmul.f32 %v605, -0.001358992
  %v607 = vadd.f32 %v606, 0.041655596
  %v608 = vmul.f32 %v605, %v607
  %v609 = vadd.f32 %v608, -0.4999988
  %v610 = vmul.f32 %v605, %v609
  %v611 = vadd.f32 1.0, %v610
  %v612 = vmul.f32 %v603, %v603
  %v613 = vmul.f32 %v612, -0.00019511016
  %v614 = vadd.f32 %v613, 0.008332121
  %v615 = vmul.f32 %v612, %v614
  %v616 = vadd.f32 %v615, -0.16666654
  %v617 = vmul.f32 %v612, %v616
  %v618 = vadd.f32 %v617, 1.0
  %v619 = vmul.f32 %v618, %v603
  %vm620 = vweird.f32 %v11
  %v621 = vadd.s32 %v604, 3
  %v622 = vand.u32 %v621, 3
  %vm623 = vcmp.lt.s32.totalorder %v622, 2
  %vm624 = vcmp.eq.s32.totalorder %v622, 0
  %v625 = vxor.u32 %v619, 2147483648
  %v626 = vsel %vm624, %v611, %v625
  %vm627 = vcmp.eq.s32.totalorder %v622, 2
  %v628 = vxor.u32 %v611, 2147483648
  %v629 = vsel %vm627, %v628, %v619
  %v630 = vsel %vm623, %v626, %v629
  %v631 = vsel %vm620, nan, %v630
  %632 = vst [vmem:[%s2] sm:$0xff] %v476
  %633 = vst [vmem:[%s2 + $0x8] sm:$0xff] %v631
  // Predicated region
  $region6: #{jvp__.22} parent=0 // pred_check
    _
  $region7: #{jvp__.22} parent=0 // pred_check_branch
    %635 = sbr.rel (0) target = $region9
  $region8: #{jvp__.22} parent=0 // pred_region
    _
  $region9: #{jvp__.22} parent=0 // pred_fallthru
    _
  // Predicated region
  $region10: #{jvp__.22} parent=0 // pred_check
    _
  $region11: #{jvp__.22} parent=0 // pred_check_branch
    %637 = sbr.rel (0) target = $region13
  $region12: #{jvp__.22} parent=0 // pred_region
    _
  $region13: #{jvp__.22} parent=0 // pred_fallthru
    _
  // Predicated region
  $region14: #{jvp__.22} parent=0 // pred_check
    _
  $region15: #{jvp__.22} parent=0 // pred_check_branch
    %639 = sbr.rel (0) target = $region17
  $region16: #{jvp__.22} parent=0 // pred_region
    _
  $region17: #{jvp__.22} parent=0 // pred_fallthru
    _
  // Predicated region
  $region18: #{jvp__.22} parent=0 // pred_check
    _
  $region19: #{jvp__.22} parent=0 // pred_check_branch
    %641 = sbr.rel (0) target = $region21
  $region20: #{jvp__.22} parent=0 // pred_region
    _
  $region21: #{jvp__.22} parent=0 // pred_fallthru
    _

// kernel: jvp__.23
$region0: #{jvp__.23}
  #allocation0 [shape = 'u32[]', space=smem, size = 0x4, offset = 0x4, fixed_abs, tag = 'smem constant byte address 0x4 - core index']
  #allocation1 [shape = 'u32[72,128]{1,0:T(1,128)}', space=vmem, size = 0x9000, scoped, tag = 'internal scratch']
  #allocation2 [shape = 'f32[1,1]{1,0:T(1,128)S(6)}', space=smem, size = 0x200, scoped, tag = 'scoped memory for jvp__.23']
  %s0 = inlined_call_operand.<no memory space> [shape: f32[1,1], index: 0, kind: input, shape index: {}]
  %s1 = inlined_call_operand.vmem [shape: f32[16,128], index: 1, kind: input, shape index: {}]
  %s2 = inlined_call_operand.vmem [shape: f32[16,128], index: 2, kind: input, shape index: {}]
  %s3 = inlined_call_operand.vmem [shape: f32[16,128], index: 3, kind: input, shape index: {}]
  %s4 = inlined_call_operand.vmem [shape: f32[16,128], index: 4, kind: output, shape index: {0}]
  %s5 = inlined_call_operand.hbm [shape: f32[1,1], index: 5, kind: output, shape index: {1}]
  %6 = xla_tuple %s4, %s5
  %s7 = sld [smem:[#allocation0]]
  $region38: #{jvp__.23} parent=0
    _
  %s9 = ssub.s32 1, %s7
  %s10 = scalar_select 0, %s9, %s7
  %11 = sst [smem:[#allocation2]] %s0
  $region1: #{jvp__.23} parent=0
    #allocation3 [shape = 'u8[512]{0}', space=vmem, size = 0x400, scoped, tag = 'output window, operand 1, single buffered']
    #allocation4 [shape = 's32[1]{0}', space=sflag, size = 0x4, scoped, tag = 'scoped memory for jvp__.23']
    %12 = vsyncpa [#allocation4], 0
    // Predicated region
    $region2: #{jvp__.23} parent=1 // pred_check
      _
    $region3: #{jvp__.23} parent=1 // pred_check_branch
      %14 = sbr.rel (0) target = $region5
    $region4: #{jvp__.23} parent=1 // pred_region
      _
    $region5: #{jvp__.23} parent=1 // pred_fallthru
      _
    // Predicated region
    $region6: #{jvp__.23} parent=1 // pred_check
      _
    $region7: #{jvp__.23} parent=1 // pred_check_branch
      %16 = sbr.rel (0) target = $region9
    $region8: #{jvp__.23} parent=1 // pred_region
      _
    $region9: #{jvp__.23} parent=1 // pred_fallthru
      _
    // Predicated region
    $region10: #{jvp__.23} parent=1 // pred_check
      _
    $region11: #{jvp__.23} parent=1 // pred_check_branch
      %18 = sbr.rel (0) target = $region13
    $region12: #{jvp__.23} parent=1 // pred_region
      _
    $region13: #{jvp__.23} parent=1 // pred_fallthru
      _
    // Predicated region
    $region14: #{jvp__.23} parent=1 // pred_check
      _
    $region15: #{jvp__.23} parent=1 // pred_check_branch
      %20 = sbr.rel (0) target = $region17
    $region16: #{jvp__.23} parent=1 // pred_region
      _
    $region17: #{jvp__.23} parent=1 // pred_fallthru
      _
    %p21 = scmp.eq.s32.totalorder 0, 0
    // Predicated region
    $region18: #{jvp__.23} parent=1 // pred_check
      %p22 = pneg %p21
    $region19: #{jvp__.23} parent=1 // pred_check_branch
      %24 = sbr.rel (%p22) target = $region21
    $region20: #{jvp__.23} parent=1 // pred_region
      %vm25 = vcmask 0
      %26 = vst.msk [vmem:[#allocation3] sm:$0x1] %vm25, 0.0
    $region21: #{jvp__.23} parent=1 // pred_fallthru
      _
    %s27 = sld [smem:[#allocation2]]
    %v28 = vld [vmem:[%s1] sm:$0xff]
    %v29 = vld [vmem:[%s1 + $0x8] sm:$0xff]
    %v30 = vld [vmem:[%s2] sm:$0xff]
    %v31 = vld [vmem:[%s2 + $0x8] sm:$0xff]
    %v32 = vmul.f32 %v28, %v28
    %v33 = vmul.f32 %v29, %v29
    %v34 = vmul.f32 %v30, %v30
    %v35 = vmul.f32 %v31, %v31
    %v36 = vadd.f32 %v32, %v34
    %v37 = vadd.f32 %v33, %v35
    %v38 = vrsqrt.pop %v36
    %v39 = vmul.f32 %v38, %v36
    %v40 = vmul.f32 %v39, %v38
    %v41 = vmul.f32 0.5, %v40
    %v42 = vsub.f32 1.5, %v41
    %v43 = vmul.f32 %v38, %v42
    %v44 = vmul.f32 %v36, %v43
    %vm45 = vcmp.eq.f32.partialorder %v36, inf
    %v46 = vsel %vm45, %v36, %v44
    %vm47 = vcmp.eq.f32.partialorder %v36, 0.0
    %v48 = vand.u32 %v36, 2147483648
    %v49 = vsel %vm47, %v48, %v46
    %v50 = vrsqrt.pop %v37
    %v51 = vmul.f32 %v50, %v37
    %v52 = vmul.f32 %v51, %v50
    %v53 = vmul.f32 0.5, %v52
    %v54 = vsub.f32 1.5, %v53
    %v55 = vmul.f32 %v50, %v54
    %v56 = vmul.f32 %v37, %v55
    %vm57 = vcmp.eq.f32.partialorder %v37, inf
    %v58 = vsel %vm57, %v37, %v56
    %vm59 = vcmp.eq.f32.partialorder %v37, 0.0
    %v60 = vand.u32 %v37, 2147483648
    %v61 = vsel %vm59, %v60, %v58
    %v62 = vstv %s27
    %v63 = vmul.f32 %v62, %v49
    %v64 = vmul.f32 %v62, %v61
    %65 = vst [vmem:[%s4] sm:$0xff] %v63
    %66 = vst [vmem:[%s4 + $0x8] sm:$0xff] %v64
    %v67 = vld [vmem:[%s3] sm:$0xff]
    %v68 = vld [vmem:[%s3 + $0x8] sm:$0xff]
    %v69 = vsub.f32 %v63, %v67
    %v70 = vsub.f32 %v64, %v68
    %v71 = vmul.f32 %v69, %v69
    %v72 = vmul.f32 %v70, %v70
    %73 = vadd.xlane.f32.xlu0 %v71
    %v74 = vpop.xlane.xlu0 %73
    %75 = vadd.xlane.f32.xlu0 %v72
    %v76 = vpop.xlane.xlu0 %75
    %v77 = vadd.f32 %v74, %v76
    %v78 = vrot.slane %v77, 4
    %v79 = vadd.f32 %v77, %v78
    %v80 = vrot.slane %v79, 2
    %v81 = vadd.f32 %v79, %v80
    %v82 = vrot.slane %v81, 1
    %v83 = vadd.f32 %v81, %v82
    %v84 = vld [vmem:[#allocation3] sm:$0x1]
    %v85 = vmul.f32 %v83, 0.00048828125
    %v86 = vadd.f32 %v84, %v85
    %vm87 = vcmask 0
    %88 = vst.msk [vmem:[#allocation3] sm:$0x1] %vm87, %v86
    // Predicated region
    $region22: #{jvp__.23} parent=1 // pred_check
      _
    $region23: #{jvp__.23} parent=1 // pred_check_branch
      %90 = sbr.rel (0) target = $region25
    $region24: #{jvp__.23} parent=1 // pred_region
      _
    $region25: #{jvp__.23} parent=1 // pred_fallthru
      _
    // Predicated region
    $region26: #{jvp__.23} parent=1 // pred_check
      _
    $region27: #{jvp__.23} parent=1 // pred_check_branch
      %92 = sbr.rel (0) target = $region29
    $region28: #{jvp__.23} parent=1 // pred_region
      %94 = vsyncadd [#allocation4], 0
      %s96 = sshll.u32 [#allocation3], 4
      %s97 = int_to_ptr.vmem [resolvable:$true] %s96
      %s98 = sshll.u32 %s5, 4
      %s99 = int_to_ptr.hbm [resolvable:$true] %s98
      %101 = dma.vmem_to_hbm [thread:$0]  %s97, 16, %s99, [#allocation4]
    $region29: #{jvp__.23} parent=1 // pred_fallthru
      _
    // Predicated region
    $region30: #{jvp__.23} parent=1 // pred_check
      _
    $region31: #{jvp__.23} parent=1 // pred_check_branch
      %103 = sbr.rel (0) target = $region33
    $region32: #{jvp__.23} parent=1 // pred_region
      _
    $region33: #{jvp__.23} parent=1 // pred_fallthru
      _
    // Predicated region
    $region34: #{jvp__.23} parent=1 // pred_check
      _
    $region35: #{jvp__.23} parent=1 // pred_check_branch
      %105 = sbr.rel (0) target = $region37
    $region36: #{jvp__.23} parent=1 // pred_region
      %107 = dma.done [#allocation4], 16
    $region37: #{jvp__.23} parent=1 // pred_fallthru
      _
    %108 = vsyncpa [#allocation4], 1

// kernel: run.1
$region0: #{run.1}
  #allocation0 [shape = 'u32[]', space=smem, size = 0x4, offset = 0x4, fixed_abs, tag = 'smem constant byte address 0x4 - core index']
  #allocation1 [shape = 'u32[72,128]{1,0:T(1,128)}', space=vmem, size = 0x9000, scoped, tag = 'internal scratch']
  %s0 = inlined_call_operand.vmem [shape: f32[32,64], index: 0, kind: input, shape index: {}]
  %s1 = inlined_call_operand.vmem [shape: f32[32,64], index: 1, kind: input, shape index: {}]
  %s2 = inlined_call_operand.vmem [shape: f32[22,32], index: 2, kind: input, shape index: {}]
  %s3 = inlined_call_operand.vmem [shape: f32[64,54], index: 3, kind: input, shape index: {}]
  %s4 = inlined_call_operand.hbm [shape: f32[1,1], index: 4, kind: output, shape index: {}]
  %s5 = sld [smem:[#allocation0]]
  $region26: #{run.1} parent=0
    _
  %s7 = ssub.s32 1, %s5
  %s8 = scalar_select 0, %s7, %s5
  $region1: #{run.1} parent=0
    #allocation2 [shape = 'u8[512]{0}', space=vmem, size = 0x400, scoped, tag = 'output window, operand 0, single buffered']
    #allocation3 [shape = 's32[1]{0}', space=sflag, size = 0x4, scoped, tag = 'scoped memory for run.1']
    %9 = vsyncpa [#allocation3], 0
    // Predicated region
    $region2: #{run.1} parent=1 // pred_check
      _
    $region3: #{run.1} parent=1 // pred_check_branch
      %11 = sbr.rel (0) target = $region5
    $region4: #{run.1} parent=1 // pred_region
      _
    $region5: #{run.1} parent=1 // pred_fallthru
      _
    // Predicated region
    $region6: #{run.1} parent=1 // pred_check
      _
    $region7: #{run.1} parent=1 // pred_check_branch
      %13 = sbr.rel (0) target = $region9
    $region8: #{run.1} parent=1 // pred_region
      _
    $region9: #{run.1} parent=1 // pred_fallthru
      _
    // Predicated region
    $region10: #{run.1} parent=1 // pred_check
      _
    $region11: #{run.1} parent=1 // pred_check_branch
      %15 = sbr.rel (0) target = $region13
    $region12: #{run.1} parent=1 // pred_region
      _
    $region13: #{run.1} parent=1 // pred_fallthru
      _
    // Predicated region
    $region14: #{run.1} parent=1 // pred_check
      _
    $region15: #{run.1} parent=1 // pred_check_branch
      %17 = sbr.rel (0) target = $region17
    $region16: #{run.1} parent=1 // pred_region
      _
    $region17: #{run.1} parent=1 // pred_fallthru
      _
    %v18 = vld [vmem:[%s0] sm:$0xff]
    %v19 = vld [vmem:[%s0 + $0x8] sm:$0xff]
    %v20 = vld [vmem:[%s0 + $0x10] sm:$0xff]
    %v21 = vld [vmem:[%s0 + $0x18] sm:$0xff]
    %v22 = vld [vmem:[%s1] sm:$0xff]
    %v23 = vld [vmem:[%s1 + $0x8] sm:$0xff]
    %v24 = vld [vmem:[%s1 + $0x10] sm:$0xff]
    %v25 = vld [vmem:[%s1 + $0x18] sm:$0xff]
    %v26 = vld [vmem:[%s2] sm:$0xff]
    %v27 = vld [vmem:[%s2 + $0x8] sm:$0xff]
    %v28 = vld [vmem:[%s2 + $0x10] sm:$0x3f]
    %v29 = vld [vmem:[%s3] sm:$0xff]
    %v30 = vld [vmem:[%s3 + $0x8] sm:$0xff]
    %v31 = vld [vmem:[%s3 + $0x10] sm:$0xff]
    %v32 = vld [vmem:[%s3 + $0x18] sm:$0xff]
    %v33 = vld [vmem:[%s3 + $0x20] sm:$0xff]
    %v34 = vld [vmem:[%s3 + $0x28] sm:$0xff]
    %v35 = vld [vmem:[%s3 + $0x30] sm:$0xff]
    %v36 = vld [vmem:[%s3 + $0x38] sm:$0xff]
    %vm37 = vcmask 523264
    %v39 = vsel %vm37, %v18, 0
    %v42 = vsel %vm37, %v19, 0
    %v45 = vsel %vm37, %v20, 0
    %v48 = vsel %vm37, %v21, 0
    %50 = vmatpush.msra.mxu0 0.0
    %51 = vmatpush.msra.mxu0 0.0
    %52 = vmatpush.msra.mxu0 0.0
    %53 = vmatpush.msra.mxu0 0.0
    %54 = vmatpush.msra.mxu0 0.0
    %55 = vmatpush.msra.mxu0 0.0
    %56 = vmatpush.msra.mxu0 0.0
    %57 = vmatpush.msra.mxu0 0.0
    %58 = vmatpush.msra.mxu0 %v36
    %59 = vmatpush.msra.mxu0 %v35
    %60 = vmatpush.msra.mxu0 %v34
    %61 = vmatpush.msra.mxu0 %v33
    %62 = vmatpush.msra.mxu0 %v32
    %63 = vmatpush.msra.mxu0 %v31
    %64 = vmatpush.msra.mxu0 %v30
    %65 = vmatpush.msra.mxu0 %v29
    %66 = vmatmul.f32.gmra.mxu0 %v39
    %v67 = vpop.f32.mrf.mxu0
    %v68 = vadd.f32 0.0, %v67
    %69 = vmatmul.f32.gmra.mxu0 %v42
    %v70 = vpop.f32.mrf.mxu0
    %v71 = vadd.f32 0.0, %v70
    %72 = vmatmul.f32.gmra.mxu0 %v45
    %v73 = vpop.f32.mrf.mxu0
    %v74 = vadd.f32 0.0, %v73
    %75 = vmatmul.f32.gmra.mxu0 %v48
    %v76 = vpop.f32.mrf.mxu0
    %v77 = vadd.f32 0.0, %v76
    %78 = vdwg.mxu0
    %vm79 = vcmask 261120
    %v81 = vsel %vm79, %v26, 0
    %v84 = vsel %vm79, %v27, 0
    %v87 = vsel %vm79, %v28, 0
    %89 = vmatpush.msra.mxu0 0.0
    %90 = vmatpush.msra.mxu0 0.0
    %91 = vmatpush.msra.mxu0 0.0
    %92 = vmatpush.msra.mxu0 0.0
    %93 = vmatpush.msra.mxu0 0.0
    %94 = vmatpush.msra.mxu0 0.0
    %95 = vmatpush.msra.mxu0 0.0
    %96 = vmatpush.msra.mxu0 0.0
    %97 = vmatpush.msra.mxu0 0.0
    %98 = vmatpush.msra.mxu0 0.0
    %99 = vmatpush.msra.mxu0 0.0
    %100 = vmatpush.msra.mxu0 0.0
    %101 = vmatpush.msra.mxu0 %v77
    %102 = vmatpush.msra.mxu0 %v74
    %103 = vmatpush.msra.mxu0 %v71
    %104 = vmatpush.msra.mxu0 %v68
    %105 = vmatmul.f32.gmra.mxu0 %v81
    %v106 = vpop.f32.mrf.mxu0
    %v107 = vadd.f32 0.0, %v106
    %108 = vmatmul.f32.gmra.mxu0 %v84
    %v109 = vpop.f32.mrf.mxu0
    %v110 = vadd.f32 0.0, %v109
    %111 = vmatmul.f32.gmra.mxu0 %v87
    %v112 = vpop.f32.mrf.mxu0
    %v113 = vadd.f32 0.0, %v112
    %114 = vdwg.mxu0
    %v116 = vsel %vm37, %v22, 0
    %v119 = vsel %vm37, %v23, 0
    %v122 = vsel %vm37, %v24, 0
    %v125 = vsel %vm37, %v25, 0
    %127 = vmatpush.msra.mxu0 0.0
    %128 = vmatpush.msra.mxu0 0.0
    %129 = vmatpush.msra.mxu0 0.0
    %130 = vmatpush.msra.mxu0 0.0
    %131 = vmatpush.msra.mxu0 0.0
    %132 = vmatpush.msra.mxu0 0.0
    %133 = vmatpush.msra.mxu0 0.0
    %134 = vmatpush.msra.mxu0 0.0
    %135 = vmatpush.msra.mxu0 %v36
    %136 = vmatpush.msra.mxu0 %v35
    %137 = vmatpush.msra.mxu0 %v34
    %138 = vmatpush.msra.mxu0 %v33
    %139 = vmatpush.msra.mxu0 %v32
    %140 = vmatpush.msra.mxu0 %v31
    %141 = vmatpush.msra.mxu0 %v30
    %142 = vmatpush.msra.mxu0 %v29
    %143 = vmatmul.f32.gmra.mxu0 %v116
    %v144 = vpop.f32.mrf.mxu0
    %v145 = vadd.f32 0.0, %v144
    %146 = vmatmul.f32.gmra.mxu0 %v119
    %v147 = vpop.f32.mrf.mxu0
    %v148 = vadd.f32 0.0, %v147
    %149 = vmatmul.f32.gmra.mxu0 %v122
    %v150 = vpop.f32.mrf.mxu0
    %v151 = vadd.f32 0.0, %v150
    %152 = vmatmul.f32.gmra.mxu0 %v125
    %v153 = vpop.f32.mrf.mxu0
    %v154 = vadd.f32 0.0, %v153
    %155 = vdwg.mxu0
    %156 = vmatpush.msra.mxu0 0.0
    %157 = vmatpush.msra.mxu0 0.0
    %158 = vmatpush.msra.mxu0 0.0
    %159 = vmatpush.msra.mxu0 0.0
    %160 = vmatpush.msra.mxu0 0.0
    %161 = vmatpush.msra.mxu0 0.0
    %162 = vmatpush.msra.mxu0 0.0
    %163 = vmatpush.msra.mxu0 0.0
    %164 = vmatpush.msra.mxu0 0.0
    %165 = vmatpush.msra.mxu0 0.0
    %166 = vmatpush.msra.mxu0 0.0
    %167 = vmatpush.msra.mxu0 0.0
    %168 = vmatpush.msra.mxu0 %v154
    %169 = vmatpush.msra.mxu0 %v151
    %170 = vmatpush.msra.mxu0 %v148
    %171 = vmatpush.msra.mxu0 %v145
    %172 = vmatmul.f32.gmra.mxu0 %v81
    %v173 = vpop.f32.mrf.mxu0
    %v174 = vadd.f32 0.0, %v173
    %175 = vmatmul.f32.gmra.mxu0 %v84
    %v176 = vpop.f32.mrf.mxu0
    %v177 = vadd.f32 0.0, %v176
    %178 = vmatmul.f32.gmra.mxu0 %v87
    %v179 = vpop.f32.mrf.mxu0
    %v180 = vadd.f32 0.0, %v179
    %181 = vdwg.mxu0
    %v182 = vmul.f32 %v18, %v18
    %v183 = vmul.f32 %v19, %v19
    %v184 = vmul.f32 %v20, %v20
    %v185 = vmul.f32 %v21, %v21
    %v187 = vsel %vm37, %v182, 0
    %v190 = vsel %vm37, %v183, 0
    %v193 = vsel %vm37, %v184, 0
    %v196 = vsel %vm37, %v185, 0
    %198 = vmatpush.msra.mxu0 0.0
    %199 = vmatpush.msra.mxu0 0.0
    %200 = vmatpush.msra.mxu0 0.0
    %201 = vmatpush.msra.mxu0 0.0
    %202 = vmatpush.msra.mxu0 0.0
    %203 = vmatpush.msra.mxu0 0.0
    %204 = vmatpush.msra.mxu0 0.0
    %205 = vmatpush.msra.mxu0 0.0
    %206 = vmatpush.msra.mxu0 %v36
    %207 = vmatpush.msra.mxu0 %v35
    %208 = vmatpush.msra.mxu0 %v34
    %209 = vmatpush.msra.mxu0 %v33
    %210 = vmatpush.msra.mxu0 %v32
    %211 = vmatpush.msra.mxu0 %v31
    %212 = vmatpush.msra.mxu0 %v30
    %213 = vmatpush.msra.mxu0 %v29
    %214 = vmatmul.f32.gmra.mxu0 %v187
    %v215 = vpop.f32.mrf.mxu0
    %v216 = vadd.f32 0.0, %v215
    %217 = vmatmul.f32.gmra.mxu0 %v190
    %v218 = vpop.f32.mrf.mxu0
    %v219 = vadd.f32 0.0, %v218
    %220 = vmatmul.f32.gmra.mxu0 %v193
    %v221 = vpop.f32.mrf.mxu0
    %v222 = vadd.f32 0.0, %v221
    %223 = vmatmul.f32.gmra.mxu0 %v196
    %v224 = vpop.f32.mrf.mxu0
    %v225 = vadd.f32 0.0, %v224
    %226 = vdwg.mxu0
    %227 = vmatpush.msra.mxu0 0.0
    %228 = vmatpush.msra.mxu0 0.0
    %229 = vmatpush.msra.mxu0 0.0
    %230 = vmatpush.msra.mxu0 0.0
    %231 = vmatpush.msra.mxu0 0.0
    %232 = vmatpush.msra.mxu0 0.0
    %233 = vmatpush.msra.mxu0 0.0
    %234 = vmatpush.msra.mxu0 0.0
    %235 = vmatpush.msra.mxu0 0.0
    %236 = vmatpush.msra.mxu0 0.0
    %237 = vmatpush.msra.mxu0 0.0
    %238 = vmatpush.msra.mxu0 0.0
    %239 = vmatpush.msra.mxu0 %v225
    %240 = vmatpush.msra.mxu0 %v222
    %241 = vmatpush.msra.mxu0 %v219
    %242 = vmatpush.msra.mxu0 %v216
    %243 = vmatmul.f32.gmra.mxu0 %v81
    %v244 = vpop.f32.mrf.mxu0
    %v245 = vadd.f32 0.0, %v244
    %246 = vmatmul.f32.gmra.mxu0 %v84
    %v247 = vpop.f32.mrf.mxu0
    %v248 = vadd.f32 0.0, %v247
    %249 = vmatmul.f32.gmra.mxu0 %v87
    %v250 = vpop.f32.mrf.mxu0
    %v251 = vadd.f32 0.0, %v250
    %252 = vdwg.mxu0
    %v253 = vmul.f32 %v107, %v107
    %v254 = vmul.f32 %v110, %v110
    %v255 = vmul.f32 %v113, %v113
    %v256 = vsub.f32 %v245, %v253
    %v257 = vsub.f32 %v248, %v254
    %v258 = vsub.f32 %v251, %v255
    %v259 = vmul.f32 %v22, %v22
    %v260 = vmul.f32 %v23, %v23
    %v261 = vmul.f32 %v24, %v24
    %v262 = vmul.f32 %v25, %v25
    %v264 = vsel %vm37, %v259, 0
    %v267 = vsel %vm37, %v260, 0
    %v270 = vsel %vm37, %v261, 0
    %v273 = vsel %vm37, %v262, 0
    %275 = vmatpush.msra.mxu0 0.0
    %276 = vmatpush.msra.mxu0 0.0
    %277 = vmatpush.msra.mxu0 0.0
    %278 = vmatpush.msra.mxu0 0.0
    %279 = vmatpush.msra.mxu0 0.0
    %280 = vmatpush.msra.mxu0 0.0
    %281 = vmatpush.msra.mxu0 0.0
    %282 = vmatpush.msra.mxu0 0.0
    %283 = vmatpush.msra.mxu0 %v36
    %284 = vmatpush.msra.mxu0 %v35
    %285 = vmatpush.msra.mxu0 %v34
    %286 = vmatpush.msra.mxu0 %v33
    %287 = vmatpush.msra.mxu0 %v32
    %288 = vmatpush.msra.mxu0 %v31
    %289 = vmatpush.msra.mxu0 %v30
    %290 = vmatpush.msra.mxu0 %v29
    %291 = vmatmul.f32.gmra.mxu0 %v264
    %v292 = vpop.f32.mrf.mxu0
    %v293 = vadd.f32 0.0, %v292
    %294 = vmatmul.f32.gmra.mxu0 %v267
    %v295 = vpop.f32.mrf.mxu0
    %v296 = vadd.f32 0.0, %v295
    %297 = vmatmul.f32.gmra.mxu0 %v270
    %v298 = vpop.f32.mrf.mxu0
    %v299 = vadd.f32 0.0, %v298
    %300 = vmatmul.f32.gmra.mxu0 %v273
    %v301 = vpop.f32.mrf.mxu0
    %v302 = vadd.f32 0.0, %v301
    %303 = vdwg.mxu0
    %304 = vmatpush.msra.mxu0 0.0
    %305 = vmatpush.msra.mxu0 0.0
    %306 = vmatpush.msra.mxu0 0.0
    %307 = vmatpush.msra.mxu0 0.0
    %308 = vmatpush.msra.mxu0 0.0
    %309 = vmatpush.msra.mxu0 0.0
    %310 = vmatpush.msra.mxu0 0.0
    %311 = vmatpush.msra.mxu0 0.0
    %312 = vmatpush.msra.mxu0 0.0
    %313 = vmatpush.msra.mxu0 0.0
    %314 = vmatpush.msra.mxu0 0.0
    %315 = vmatpush.msra.mxu0 0.0
    %316 = vmatpush.msra.mxu0 %v302
    %317 = vmatpush.msra.mxu0 %v299
    %318 = vmatpush.msra.mxu0 %v296
    %319 = vmatpush.msra.mxu0 %v293
    %320 = vmatmul.f32.gmra.mxu0 %v81
    %v321 = vpop.f32.mrf.mxu0
    %v322 = vadd.f32 0.0, %v321
    %323 = vmatmul.f32.gmra.mxu0 %v84
    %v324 = vpop.f32.mrf.mxu0
    %v325 = vadd.f32 0.0, %v324
    %326 = vmatmul.f32.gmra.mxu0 %v87
    %v327 = vpop.f32.mrf.mxu0
    %v328 = vadd.f32 0.0, %v327
    %329 = vdwg.mxu0
    %v330 = vmul.f32 %v174, %v174
    %v331 = vmul.f32 %v177, %v177
    %v332 = vmul.f32 %v180, %v180
    %v333 = vsub.f32 %v322, %v330
    %v334 = vsub.f32 %v325, %v331
    %v335 = vsub.f32 %v328, %v332
    %v336 = vmul.f32 %v18, %v22
    %v337 = vmul.f32 %v19, %v23
    %v338 = vmul.f32 %v20, %v24
    %v339 = vmul.f32 %v21, %v25
    %v341 = vsel %vm37, %v336, 0
    %v344 = vsel %vm37, %v337, 0
    %v347 = vsel %vm37, %v338, 0
    %v350 = vsel %vm37, %v339, 0
    %352 = vmatpush.msra.mxu0 0.0
    %353 = vmatpush.msra.mxu0 0.0
    %354 = vmatpush.msra.mxu0 0.0
    %355 = vmatpush.msra.mxu0 0.0
    %356 = vmatpush.msra.mxu0 0.0
    %357 = vmatpush.msra.mxu0 0.0
    %358 = vmatpush.msra.mxu0 0.0
    %359 = vmatpush.msra.mxu0 0.0
    %360 = vmatpush.msra.mxu0 %v36
    %361 = vmatpush.msra.mxu0 %v35
    %362 = vmatpush.msra.mxu0 %v34
    %363 = vmatpush.msra.mxu0 %v33
    %364 = vmatpush.msra.mxu0 %v32
    %365 = vmatpush.msra.mxu0 %v31
    %366 = vmatpush.msra.mxu0 %v30
    %367 = vmatpush.msra.mxu0 %v29
    %368 = vmatmul.f32.gmra.mxu0 %v341
    %v369 = vpop.f32.mrf.mxu0
    %v370 = vadd.f32 0.0, %v369
    %371 = vmatmul.f32.gmra.mxu0 %v344
    %v372 = vpop.f32.mrf.mxu0
    %v373 = vadd.f32 0.0, %v372
    %374 = vmatmul.f32.gmra.mxu0 %v347
    %v375 = vpop.f32.mrf.mxu0
    %v376 = vadd.f32 0.0, %v375
    %377 = vmatmul.f32.gmra.mxu0 %v350
    %v378 = vpop.f32.mrf.mxu0
    %v379 = vadd.f32 0.0, %v378
    %380 = vdwg.mxu0
    %381 = vmatpush.msra.mxu0 0.0
    %382 = vmatpush.msra.mxu0 0.0
    %383 = vmatpush.msra.mxu0 0.0
    %384 = vmatpush.msra.mxu0 0.0
    %385 = vmatpush.msra.mxu0 0.0
    %386 = vmatpush.msra.mxu0 0.0
    %387 = vmatpush.msra.mxu0 0.0
    %388 = vmatpush.msra.mxu0 0.0
    %389 = vmatpush.msra.mxu0 0.0
    %390 = vmatpush.msra.mxu0 0.0
    %391 = vmatpush.msra.mxu0 0.0
    %392 = vmatpush.msra.mxu0 0.0
    %393 = vmatpush.msra.mxu0 %v379
    %394 = vmatpush.msra.mxu0 %v376
    %395 = vmatpush.msra.mxu0 %v373
    %396 = vmatpush.msra.mxu0 %v370
    %397 = vmatmul.f32.gmra.mxu0 %v81
    %v398 = vpop.f32.mrf.mxu0
    %v399 = vadd.f32 0.0, %v398
    %400 = vmatmul.f32.gmra.mxu0 %v84
    %v401 = vpop.f32.mrf.mxu0
    %v402 = vadd.f32 0.0, %v401
    %403 = vmatmul.f32.gmra.mxu0 %v87
    %v404 = vpop.f32.mrf.mxu0
    %v405 = vadd.f32 0.0, %v404
    %406 = vdwg.mxu0
    %v407 = vmul.f32 %v107, %v174
    %v408 = vmul.f32 %v110, %v177
    %v409 = vmul.f32 %v113, %v180
    %v410 = vsub.f32 %v399, %v407
    %v411 = vsub.f32 %v402, %v408
    %v412 = vsub.f32 %v405, %v409
    %v413 = vmul.f32 %v107, 2.0
    %v414 = vmul.f32 %v110, 2.0
    %v415 = vmul.f32 %v113, 2.0
    %v416 = vmul.f32 %v413, %v174
    %v417 = vmul.f32 %v414, %v177
    %v418 = vmul.f32 %v415, %v180
    %v419 = vadd.f32 %v416, 0.0001
    %v420 = vadd.f32 %v417, 0.0001
    %v421 = vadd.f32 %v418, 0.0001
    %v422 = vmul.f32 %v410, 2.0
    %v423 = vmul.f32 %v411, 2.0
    %v424 = vmul.f32 %v412, 2.0
    %v425 = vadd.f32 %v422, 0.0009
    %v426 = vadd.f32 %v423, 0.0009
    %v427 = vadd.f32 %v424, 0.0009
    %v428 = vmul.f32 %v419, %v425
    %v429 = vmul.f32 %v420, %v426
    %v430 = vmul.f32 %v421, %v427
    %v431 = vadd.f32 %v253, %v330
    %v432 = vadd.f32 %v254, %v331
    %v433 = vadd.f32 %v255, %v332
    %v434 = vadd.f32 %v431, 0.0001
    %v435 = vadd.f32 %v432, 0.0001
    %v436 = vadd.f32 %v433, 0.0001
    %v437 = vadd.f32 %v256, %v333
    %v438 = vadd.f32 %v257, %v334
    %v439 = vadd.f32 %v258, %v335
    %v440 = vadd.f32 %v437, 0.0009
    %v441 = vadd.f32 %v438, 0.0009
    %v442 = vadd.f32 %v439, 0.0009
    %v443 = vmul.f32 %v434, %v440
    %v444 = vmul.f32 %v435, %v441
    %v445 = vmul.f32 %v436, %v442
    %v446 = vrcp.pop %v443
    %v447 = vmul.f32 %v443, %v446
    %v448 = vsub.f32 1.0, %v447
    %v449 = vmul.f32 %v446, %v448
    %v450 = vadd.f32 %v446, %v449
    %vm451 = vweird.f32 %v443
    %vm452 = vweird.f32 %v446
    %vm453 = vmor %vm451, %vm452
    %v454 = vsel %vm453, %v446, %v450
    %v455 = vand.u32 2147483647, %v443
    %vm456 = vcmp.eq.f32.partialorder %v455, 8.507059e+37
    %v457 = vand.u32 %v443, 2147483648
    %v458 = vor.u32 1.1754944e-38, %v457
    %v459 = vsel %vm456, %v458, %v454
    %v460 = vmul.f32 %v428, %v459
    %v461 = vrcp.pop %v444
    %v462 = vmul.f32 %v444, %v461
    %v463 = vsub.f32 1.0, %v462
    %v464 = vmul.f32 %v461, %v463
    %v465 = vadd.f32 %v461, %v464
    %vm466 = vweird.f32 %v444
    %vm467 = vweird.f32 %v461
    %vm468 = vmor %vm466, %vm467
    %v469 = vsel %vm468, %v461, %v465
    %v470 = vand.u32 2147483647, %v444
    %vm471 = vcmp.eq.f32.partialorder %v470, 8.507059e+37
    %v472 = vand.u32 %v444, 2147483648
    %v473 = vor.u32 1.1754944e-38, %v472
    %v474 = vsel %vm471, %v473, %v469
    %v475 = vmul.f32 %v429, %v474
    %v476 = vrcp.pop %v445
    %v477 = vmul.f32 %v445, %v476
    %v478 = vsub.f32 1.0, %v477
    %v479 = vmul.f32 %v476, %v478
    %v480 = vadd.f32 %v476, %v479
    %vm481 = vweird.f32 %v445
    %vm482 = vweird.f32 %v476
    %vm483 = vmor %vm481, %vm482
    %v484 = vsel %vm483, %v476, %v480
    %v485 = vand.u32 2147483647, %v445
    %vm486 = vcmp.eq.f32.partialorder %v485, 8.507059e+37
    %v487 = vand.u32 %v445, 2147483648
    %v488 = vor.u32 1.1754944e-38, %v487
    %v489 = vsel %vm486, %v488, %v484
    %v490 = vmul.f32 %v430, %v489
    %vm491 = vcmask 441344
    %v492 = vsel %vm491, %v460, 0.0
    %493 = vadd.xlane.f32.xlu0 %v492
    %v494 = vpop.xlane.xlu0 %493
    %v495 = vsel %vm491, %v475, 0.0
    %496 = vadd.xlane.f32.xlu0 %v495
    %v497 = vpop.xlane.xlu0 %496
    %vm498 = vcmask 439296
    %v499 = vsel %vm498, %v490, 0.0
    %500 = vadd.xlane.f32.xlu0 %v499
    %v501 = vpop.xlane.xlu0 %500
    %v502 = vadd.f32 %v494, %v497
    %vm503 = vcmask 1045504
    %v504 = vsel %vm503, %v501, 0.0
    %v505 = vadd.f32 %v502, %v504
    %v506 = vrot.slane %v505, 4
    %v507 = vadd.f32 %v505, %v506
    %v508 = vrot.slane %v507, 2
    %v509 = vadd.f32 %v507, %v508
    %v510 = vrot.slane %v509, 1
    %v511 = vadd.f32 %v509, %v510
    %v512 = vrcp.pop 1188.0
    %v513 = vmul.f32 1188.0, %v512
    %v514 = vsub.f32 1.0, %v513
    %v515 = vmul.f32 %v512, %v514
    %v516 = vadd.f32 %v512, %v515
    %vm517 = vweird.f32 %v512
    %v518 = vsel %vm517, %v512, %v516
    %v519 = vmul.f32 %v511, %v518
    %vm520 = vcmask 0
    %521 = vst.msk [vmem:[#allocation2] sm:$0x1] %vm520, %v519
    // Predicated region
    $region18: #{run.1} parent=1 // pred_check
      _
    $region19: #{run.1} parent=1 // pred_check_branch
      %523 = sbr.rel (0) target = $region21
    $region20: #{run.1} parent=1 // pred_region
      %525 = vsyncadd [#allocation3], 0
      %s527 = sshll.u32 [#allocation2], 4
      %s528 = int_to_ptr.vmem [resolvable:$true] %s527
      %s529 = sshll.u32 %s4, 4
      %s530 = int_to_ptr.hbm [resolvable:$true] %s529
      %532 = dma.vmem_to_hbm [thread:$0]  %s528, 16, %s530, [#allocation3]
    $region21: #{run.1} parent=1 // pred_fallthru
      _
    // Predicated region
    $region22: #{run.1} parent=1 // pred_check
      _
    $region23: #{run.1} parent=1 // pred_check_branch
      %534 = sbr.rel (0) target = $region25
    $region24: #{run.1} parent=1 // pred_region
      %536 = dma.done [#allocation3], 16
    $region25: #{run.1} parent=1 // pred_fallthru
      _
    %537 = vsyncpa [#allocation3], 1

// kernel: closed_call.20
$region0: #{closed_call.20}
  #allocation0 [shape = 'u32[]', space=smem, size = 0x4, offset = 0x4, fixed_abs, tag = 'smem constant byte address 0x4 - core index']
  #allocation1 [shape = 'u32[72,128]{1,0:T(1,128)}', space=vmem, size = 0x9000, scoped, tag = 'internal scratch']
  %s0 = inlined_call_operand.vmem [shape: f32[1,6], index: 0, kind: input, shape index: {}]
  %s1 = inlined_call_operand.vmem [shape: f32[16,128], index: 1, kind: input, shape index: {}]
  %s2 = inlined_call_operand.vmem [shape: f32[16,128], index: 2, kind: input, shape index: {}, may-alias: {2,5}]
  %s3 = inlined_call_operand.vmem [shape: f32[16,128], index: 3, kind: input, shape index: {}, may-alias: {3,6}]
  %s4 = inlined_call_operand.vmem [shape: f32[16,128], index: 4, kind: input, shape index: {}, may-alias: {4,7}]
  %s5 = inlined_call_operand.vmem [shape: f32[16,128], index: 5, kind: output, shape index: {0}, may-alias: {2,5}]
  %s6 = inlined_call_operand.vmem [shape: f32[16,128], index: 6, kind: output, shape index: {1}, may-alias: {3,6}]
  %s7 = inlined_call_operand.vmem [shape: f32[16,128], index: 7, kind: output, shape index: {2}, may-alias: {4,7}]
  %8 = xla_tuple %s5, %s6, %s7
  %s9 = sld [smem:[#allocation0]]
  $region50: #{closed_call.20} parent=0
    _
  %s11 = ssub.s32 1, %s9
  %s12 = scalar_select 0, %s11, %s9
  $region1: #{closed_call.20} parent=0
    #allocation2 [shape = 'u8[512]{0}', space=smem, size = 0x200, scoped, tag = 'input window, operand 0, single buffered']
    #allocation3 [shape = 's32[1]{0}', space=sflag, size = 0x4, scoped, tag = 'scoped memory for closed_call.20']
    %13 = vsyncpa [#allocation3], 0
    // Predicated region
    $region2: #{closed_call.20} parent=1 // pred_check
      _
    $region3: #{closed_call.20} parent=1 // pred_check_branch
      %15 = sbr.rel (0) target = $region5
    $region4: #{closed_call.20} parent=1 // pred_region
      %17 = vsyncadd [#allocation3], 0
      %s19 = sshll.u32 %s0, 4
      %s20 = int_to_ptr.vmem [resolvable:$true] %s19
      %22 = dma.vmem_to_smem %s20, 16, [#allocation2], [#allocation3]
    $region5: #{closed_call.20} parent=1 // pred_fallthru
      _
    // Predicated region
    $region6: #{closed_call.20} parent=1 // pred_check
      _
    $region7: #{closed_call.20} parent=1 // pred_check_branch
      %24 = sbr.rel (0) target = $region9
    $region8: #{closed_call.20} parent=1 // pred_region
      _
    $region9: #{closed_call.20} parent=1 // pred_fallthru
      _
    // Predicated region
    $region10: #{closed_call.20} parent=1 // pred_check
      _
    $region11: #{closed_call.20} parent=1 // pred_check_branch
      %26 = sbr.rel (0) target = $region13
    $region12: #{closed_call.20} parent=1 // pred_region
      _
    $region13: #{closed_call.20} parent=1 // pred_fallthru
      _
    // Predicated region
    $region14: #{closed_call.20} parent=1 // pred_check
      _
    $region15: #{closed_call.20} parent=1 // pred_check_branch
      %28 = sbr.rel (0) target = $region17
    $region16: #{closed_call.20} parent=1 // pred_region
      _
    $region17: #{closed_call.20} parent=1 // pred_fallthru
      _
    // Predicated region
    $region18: #{closed_call.20} parent=1 // pred_check
      _
    $region19: #{closed_call.20} parent=1 // pred_check_branch
      %30 = sbr.rel (0) target = $region21
    $region20: #{closed_call.20} parent=1 // pred_region
      _
    $region21: #{closed_call.20} parent=1 // pred_fallthru
      _
    // Predicated region
    $region22: #{closed_call.20} parent=1 // pred_check
      _
    $region23: #{closed_call.20} parent=1 // pred_check_branch
      %32 = sbr.rel (0) target = $region25
    $region24: #{closed_call.20} parent=1 // pred_region
      %34 = dma.done [#allocation3], 16
    $region25: #{closed_call.20} parent=1 // pred_fallthru
      _
    %35 = sfence
    %s36 = sld [smem:[#allocation2]]
    %s37 = sld [smem:[#allocation2 + $0x1]]
    %s38 = sld [smem:[#allocation2 + $0x2]]
    %s39 = sld [smem:[#allocation2 + $0x3]]
    %s40 = sld [smem:[#allocation2 + $0x4]]
    %s41 = sld [smem:[#allocation2 + $0x5]]
    %v42 = vld [vmem:[%s1] sm:$0xff]
    %v43 = vld [vmem:[%s1 + $0x8] sm:$0xff]
    %v44 = vld [vmem:[%s2] sm:$0xff]
    %v45 = vld [vmem:[%s2 + $0x8] sm:$0xff]
    %v46 = vstv %s37
    %v47 = vmul.f32 %v46, %v44
    %v48 = vmul.f32 %v46, %v45
    %s49 = ssub.f32 1.0, %s37
    %v50 = vstv %s49
    %v51 = vmul.f32 %v50, %v42
    %v52 = vmul.f32 %v50, %v43
    %v53 = vadd.f32 %v47, %v51
    %v54 = vadd.f32 %v48, %v52
    %v55 = vld [vmem:[%s3] sm:$0xff]
    %v56 = vld [vmem:[%s3 + $0x8] sm:$0xff]
    %v57 = vstv %s38
    %v58 = vmul.f32 %v57, %v55
    %v59 = vmul.f32 %v57, %v56
    %s60 = ssub.f32 1.0, %s38
    %v61 = vstv %s60
    %v62 = vmul.f32 %v61, %v42
    %v63 = vmul.f32 %v61, %v43
    %v64 = vmul.f32 %v62, %v42
    %v65 = vmul.f32 %v63, %v43
    %v66 = vadd.f32 %v58, %v64
    %v67 = vadd.f32 %v59, %v65
    %68 = vst [vmem:[%s5] sm:$0xff] %v53
    %69 = vst [vmem:[%s5 + $0x8] sm:$0xff] %v54
    %70 = vst [vmem:[%s6] sm:$0xff] %v66
    %71 = vst [vmem:[%s6 + $0x8] sm:$0xff] %v67
    %v72 = vstv %s41
    %v73 = vmul.f32 %v66, %v72
    %v74 = vmul.f32 %v67, %v72
    %v75 = vrsqrt.pop %v73
    %v76 = vmul.f32 %v75, %v73
    %v77 = vmul.f32 %v76, %v75
    %v78 = vmul.f32 0.5, %v77
    %v79 = vsub.f32 1.5, %v78
    %v80 = vmul.f32 %v75, %v79
    %v81 = vmul.f32 %v73, %v80
    %vm82 = vcmp.eq.f32.partialorder %v73, inf
    %v83 = vsel %vm82, %v73, %v81
    %vm84 = vcmp.eq.f32.partialorder %v73, 0.0
    %v85 = vand.u32 %v73, 2147483648
    %v86 = vsel %vm84, %v85, %v83
    %v87 = vrsqrt.pop %v74
    %v88 = vmul.f32 %v87, %v74
    %v89 = vmul.f32 %v88, %v87
    %v90 = vmul.f32 0.5, %v89
    %v91 = vsub.f32 1.5, %v90
    %v92 = vmul.f32 %v87, %v91
    %v93 = vmul.f32 %v74, %v92
    %vm94 = vcmp.eq.f32.partialorder %v74, inf
    %v95 = vsel %vm94, %v74, %v93
    %vm96 = vcmp.eq.f32.partialorder %v74, 0.0
    %v97 = vand.u32 %v74, 2147483648
    %v98 = vsel %vm96, %v97, %v95
    %v99 = vstv %s39
    %v100 = vadd.f32 %v86, %v99
    %v101 = vadd.f32 %v98, %v99
    %v102 = vld [vmem:[%s4] sm:$0xff]
    %v103 = vld [vmem:[%s4 + $0x8] sm:$0xff]
    %v104 = vstv %s40
    %v105 = vmul.f32 %v53, %v104
    %v106 = vmul.f32 %v54, %v104
    %v107 = vstv %s36
    %v108 = vmul.f32 %v107, %v105
    %v109 = vmul.f32 %v107, %v106
    %v110 = vrcp.pop %v100
    %v111 = vrcp.pop %v101
    %v112 = vmul.f32 %v108, %v110
    %v113 = vmul.f32 %v109, %v111
    %v114 = vsub.f32 %v102, %v112
    %v115 = vsub.f32 %v103, %v113
    %116 = vst [vmem:[%s7] sm:$0xff] %v114
    %117 = vst [vmem:[%s7 + $0x8] sm:$0xff] %v115
    // Predicated region
    $region26: #{closed_call.20} parent=1 // pred_check
      _
    $region27: #{closed_call.20} parent=1 // pred_check_branch
      %119 = sbr.rel (0) target = $region29
    $region28: #{closed_call.20} parent=1 // pred_region
      _
    $region29: #{closed_call.20} parent=1 // pred_fallthru
      _
    // Predicated region
    $region30: #{closed_call.20} parent=1 // pred_check
      _
    $region31: #{closed_call.20} parent=1 // pred_check_branch
      %121 = sbr.rel (0) target = $region33
    $region32: #{closed_call.20} parent=1 // pred_region
      _
    $region33: #{closed_call.20} parent=1 // pred_fallthru
      _
    // Predicated region
    $region34: #{closed_call.20} parent=1 // pred_check
      _
    $region35: #{closed_call.20} parent=1 // pred_check_branch
      %123 = sbr.rel (0) target = $region37
    $region36: #{closed_call.20} parent=1 // pred_region
      _
    $region37: #{closed_call.20} parent=1 // pred_fallthru
      _
    // Predicated region
    $region38: #{closed_call.20} parent=1 // pred_check
      _
    $region39: #{closed_call.20} parent=1 // pred_check_branch
      %125 = sbr.rel (0) target = $region41
    $region40: #{closed_call.20} parent=1 // pred_region
      _
    $region41: #{closed_call.20} parent=1 // pred_fallthru
      _
    // Predicated region
    $region42: #{closed_call.20} parent=1 // pred_check
      _
    $region43: #{closed_call.20} parent=1 // pred_check_branch
      %127 = sbr.rel (0) target = $region45
    $region44: #{closed_call.20} parent=1 // pred_region
      _
    $region45: #{closed_call.20} parent=1 // pred_fallthru
      _
    // Predicated region
    $region46: #{closed_call.20} parent=1 // pred_check
      _
    $region47: #{closed_call.20} parent=1 // pred_check_branch
      %129 = sbr.rel (0) target = $region49
    $region48: #{closed_call.20} parent=1 // pred_region
      _
    $region49: #{closed_call.20} parent=1 // pred_fallthru
      _
    %130 = vsyncpa [#allocation3], 1

</llo_original>
